<compile_context>
chip_gen: v7x
topology: tpu7x:2x2x1
jax: 0.10.0
libtpu: 0.0.40
codegen_flags: <defaults>
</compile_context>

<pallas_src>
import jax
import jax.numpy as jnp
import numpy as np
from jax.experimental import pallas as pl
from jax.experimental.pallas import tpu as pltpu

INPUT_SIZE = 5
HIDDEN_SIZE = 64
NUM_LAYERS = 2  # hard-wired as two explicit layers below


def lstm_fc_kernel(x_ref,                       # (T*B, I)  time-major, flattened
                   wih0_ref, whh0_ref, b0_ref,  # (I, 4H), (H, 4H), (1, 4H)   [i,f,o,g] order
                   w1_ref, b1_ref,              # (2H, 4H) = [wih1; whh1], (1, 4H)
                   fc1w_ref, fc1b_ref,          # (H, 32), (1, 32)
                   fc2w_ref, fc2b_ref,          # (32, 16), (1, 16)
                   fc3w_ref, fc3b_ref,          # (16, 3),  (1, 3)
                   out_ref,                     # (B, 3)
                   xp_ref):                     # scratch: (T*B, 4H) hoisted input projection
    B = out_ref.shape[0]
    TB = x_ref.shape[0]
    T = TB // B
    H = whh0_ref.shape[0]

    # Weights / biases read once, outside the recurrence.
    whh0 = whh0_ref[...]
    w1 = w1_ref[...]
    b1 = jnp.broadcast_to(b1_ref[...], (B, 4 * H))   # hoisted broadcast

    # Hoisted layer-0 input projection (+ bias): no time dependency, one matmul.
    xp_ref[...] = (jnp.dot(x_ref[...], wih0_ref[...],
                           preferred_element_type=jnp.float32)
                   + b0_ref[...])

    def gates_to_hc(gates, c):
        # Gate order [i, f, o, g]: one sigmoid over the contiguous 3H slab,
        # one tanh over the last H lanes.
        sig = jax.nn.sigmoid(gates[:, :3 * H])
        i = sig[:, 0 * H:1 * H]
        f = sig[:, 1 * H:2 * H]
        o = sig[:, 2 * H:3 * H]
        g = jnp.tanh(gates[:, 3 * H:])
        c_new = f * c + i * g
        h_new = o * jnp.tanh(c_new)
        return h_new, c_new

    def step(t, carry):
        h0, c0, h1, c1 = carry
        # Layer 0: only the recurrent matmul is left on the per-step path.
        g0 = xp_ref[pl.ds(t * B, B), :] + jnp.dot(
            h0, whh0, preferred_element_type=jnp.float32)
        h0, c0 = gates_to_hc(g0, c0)
        # Layer 1 (inter-layer dropout is identity at eval time): single fused
        # matmul with K = 2H = 128.
        g1 = jnp.dot(jnp.concatenate([h0, h1], axis=1), w1,
                     preferred_element_type=jnp.float32) + b1
        h1, c1 = gates_to_hc(g1, c1)
        return h0, c0, h1, c1

    zeros = jnp.zeros((B, H), jnp.float32)
    _, _, h1, _ = jax.lax.fori_loop(
        0, T, step, (zeros, zeros, zeros, zeros), unroll=True)

    # FC head on the last hidden state of the top LSTM layer.
    z = jnp.maximum(
        jnp.dot(h1, fc1w_ref[...], preferred_element_type=jnp.float32) + fc1b_ref[...], 0.0)
    z = jnp.maximum(
        jnp.dot(z, fc2w_ref[...], preferred_element_type=jnp.float32) + fc2b_ref[...], 0.0)
    out_ref[...] = (
        jnp.dot(z, fc3w_ref[...], preferred_element_type=jnp.float32) + fc3b_ref[...])


def _reorder_gates(w):
    """Permute the last-dim gate blocks from PyTorch [i, f, g, o] to [i, f, o, g]."""
    H = w.shape[-1] // 4
    return jnp.concatenate(
        [w[..., :2 * H], w[..., 3 * H:4 * H], w[..., 2 * H:3 * H]], axis=-1)


def lstm_model_forward(x, params):
    """x: (B, T, I) float32, returns (B, 3) float32."""
    B, T, I = x.shape
    H = params["whh0"].shape[0]

    # Time-major flattened input rows: row t*B + b  <-  x[b, t, :].
    x2d = jnp.transpose(x, (1, 0, 2)).reshape(T * B, I)

    # Reorder gate columns to [i, f, o, g] for the kernel; stack layer-1 weights.
    wih0 = _reorder_gates(params["wih0"])
    whh0 = _reorder_gates(params["whh0"])
    b0 = _reorder_gates(params["b0"])
    wih1 = _reorder_gates(params["wih1"])
    whh1 = _reorder_gates(params["whh1"])
    b1 = _reorder_gates(params["b1"])
    w1 = jnp.concatenate([wih1, whh1], axis=0)        # (2H, 4H)

    inputs = [
        x2d,
        wih0, whh0, b0,
        w1, b1,
        params["fc1w"], params["fc1b"],
        params["fc2w"], params["fc2b"],
        params["fc3w"], params["fc3b"],
    ]
    vmem = pl.BlockSpec(memory_space=pltpu.MemorySpace.VMEM)
    return pl.pallas_call(
        lstm_fc_kernel,
        out_shape=jax.ShapeDtypeStruct((B, 3), jnp.float32),
        in_specs=[vmem] * len(inputs),
        out_specs=vmem,
        scratch_shapes=[pltpu.VMEM((T * B, 4 * H), jnp.float32)],
    )(*inputs)


def init_params(key, input_size=INPUT_SIZE, hidden_size=HIDDEN_SIZE):
    """Deterministic synthetic parameters (PyTorch-style uniform init, gate order [i,f,g,o])."""
    H = hidden_size
    k_lstm = 1.0 / np.sqrt(H)
    keys = jax.random.split(key, 16)

    def u(k, shape, bound):
        return jax.random.uniform(k, shape, jnp.float32, -bound, bound)

    params = {
        # layer 0: weights stored transposed (in, 4H); b = b_ih + b_hh, shape (1, 4H)
        "wih0": u(keys[0], (input_size, 4 * H), k_lstm),
        "whh0": u(keys[1], (H, 4 * H), k_lstm),
        "b0":   u(keys[2], (1, 4 * H), k_lstm) + u(keys[3], (1, 4 * H), k_lstm),
        # layer 1
        "wih1": u(keys[4], (H, 4 * H), k_lstm),
        "whh1": u(keys[5], (H, 4 * H), k_lstm),
        "b1":   u(keys[6], (1, 4 * H), k_lstm) + u(keys[7], (1, 4 * H), k_lstm),
        # fc head: (in, out) layout
        "fc1w": u(keys[8],  (H, 32), 1.0 / np.sqrt(H)),
        "fc1b": u(keys[9],  (1, 32), 1.0 / np.sqrt(H)),
        "fc2w": u(keys[10], (32, 16), 1.0 / np.sqrt(32)),
        "fc2b": u(keys[11], (1, 16), 1.0 / np.sqrt(32)),
        "fc3w": u(keys[12], (16, 3), 1.0 / np.sqrt(16)),
        "fc3b": u(keys[13], (1, 3), 1.0 / np.sqrt(16)),
    }
    return params


def reference_forward(x, p):
    """Pure-JAX reference implementing the same semantics (eval mode), PyTorch gate order."""
    B, T, I = x.shape
    H = p["whh0"].shape[0]

    def cell(x_t, h, c, wih, whh, b):
        g = x_t @ wih + h @ whh + b
        i = jax.nn.sigmoid(g[:, 0 * H:1 * H])
        f = jax.nn.sigmoid(g[:, 1 * H:2 * H])
        gg = jnp.tanh(g[:, 2 * H:3 * H])
        o = jax.nn.sigmoid(g[:, 3 * H:4 * H])
        c = f * c + i * gg
        return o * jnp.tanh(c), c

    h0 = c0 = h1 = c1 = jnp.zeros((B, H), jnp.float32)
    for t in range(T):
        h0, c0 = cell(x[:, t, :], h0, c0, p["wih0"], p["whh0"], p["b0"])
        h1, c1 = cell(h0, h1, c1, p["wih1"], p["whh1"], p["b1"])
    z = jnp.maximum(h1 @ p["fc1w"] + p["fc1b"], 0.0)
    z = jnp.maximum(z @ p["fc2w"] + p["fc2b"], 0.0)
    return z @ p["fc3w"] + p["fc3b"]


if __name__ == "__main__":
    key = jax.random.PRNGKey(0)
    k_x, k_p = jax.random.split(key)

    B, T, I = 2, 8, INPUT_SIZE
    x = jax.random.normal(k_x, (B, T, I), jnp.float32)
    params = init_params(k_p)

    out = lstm_model_forward(x, params)
    out = jax.block_until_ready(out)

    ref = reference_forward(x, params)
    np.testing.assert_allclose(np.asarray(out), np.asarray(ref), rtol=1e-4, atol=1e-4)

    assert out.shape == (B, 3)
    print("KERNEL_OK")
</pallas_src>

<mosaic_0001>
module attributes {stable_mosaic.version = 11 : i64} {
  func.func @lstm_fc_kernel(%arg0: memref<16x5xf32, #tpu.memory_space<vmem>>, %arg1: memref<5x256xf32, #tpu.memory_space<vmem>>, %arg2: memref<64x256xf32, #tpu.memory_space<vmem>>, %arg3: memref<1x256xf32, #tpu.memory_space<vmem>>, %arg4: memref<128x256xf32, #tpu.memory_space<vmem>>, %arg5: memref<1x256xf32, #tpu.memory_space<vmem>>, %arg6: memref<64x32xf32, #tpu.memory_space<vmem>>, %arg7: memref<1x32xf32, #tpu.memory_space<vmem>>, %arg8: memref<32x16xf32, #tpu.memory_space<vmem>>, %arg9: memref<1x16xf32, #tpu.memory_space<vmem>>, %arg10: memref<16x3xf32, #tpu.memory_space<vmem>>, %arg11: memref<1x3xf32, #tpu.memory_space<vmem>>, %arg12: memref<2x3xf32, #tpu.memory_space<vmem>>, %arg13: memref<16x256xf32, #tpu.memory_space<vmem>>) attributes {dimension_semantics = [], scalar_prefetch = 0 : i64, scratch_operands = 1 : i64, tpu.core_type = #tpu.core_type<tc>} {
    %c0 = arith.constant 0 : index
    %c0_0 = arith.constant 0 : index
    %0 = vector.load %arg2[%c0, %c0_0] : memref<64x256xf32, #tpu.memory_space<vmem>>, vector<64x256xf32>
    %c0_1 = arith.constant 0 : index
    %c0_2 = arith.constant 0 : index
    %1 = vector.load %arg4[%c0_1, %c0_2] : memref<128x256xf32, #tpu.memory_space<vmem>>, vector<128x256xf32>
    %c0_3 = arith.constant 0 : index
    %c0_4 = arith.constant 0 : index
    %2 = vector.load %arg5[%c0_3, %c0_4] : memref<1x256xf32, #tpu.memory_space<vmem>>, vector<1x256xf32>
    %3 = vector.shape_cast %2 : vector<1x256xf32> to vector<1x256xf32>
    %4 = vector.broadcast %3 : vector<1x256xf32> to vector<2x256xf32>
    %c0_5 = arith.constant 0 : index
    %c0_6 = arith.constant 0 : index
    %5 = vector.load %arg0[%c0_5, %c0_6] : memref<16x5xf32, #tpu.memory_space<vmem>>, vector<16x5xf32>
    %c0_7 = arith.constant 0 : index
    %c0_8 = arith.constant 0 : index
    %6 = vector.load %arg1[%c0_7, %c0_8] : memref<5x256xf32, #tpu.memory_space<vmem>>, vector<5x256xf32>
    %cst = arith.constant dense<0.000000e+00> : vector<16x256xf32>
    %7 = tpu.matmul %5, %6, %cst {dimension_numbers = #tpu.dot_dimension_numbers<[1], [0], [0], [1], [0, 0, 1, 1], [], []>} : vector<16x5xf32>, vector<5x256xf32>, vector<16x256xf32> -> vector<16x256xf32>
    %c0_9 = arith.constant 0 : index
    %c0_10 = arith.constant 0 : index
    %8 = vector.load %arg3[%c0_9, %c0_10] : memref<1x256xf32, #tpu.memory_space<vmem>>, vector<1x256xf32>
    %9 = vector.broadcast %8 : vector<1x256xf32> to vector<16x256xf32>
    %10 = arith.addf %7, %9 : vector<16x256xf32>
    %c0_11 = arith.constant 0 : index
    %c0_12 = arith.constant 0 : index
    %11 = vector.load %arg13[%c0_11, %c0_12] : memref<16x256xf32, #tpu.memory_space<vmem>>, vector<16x256xf32>
    tpu.vector_store %arg13[%c0_11, %c0_12], %10 {strides = array<i32>} : memref<16x256xf32, #tpu.memory_space<vmem>>, vector<16x256xf32>,
    %cst_13 = arith.constant 0.000000e+00 : f32
    %12 = vector.broadcast %cst_13 : f32 to vector<2x64xf32>
    %c0_i32 = arith.constant 0 : i32
    %c2_i32 = arith.constant 2 : i32
    %13 = arith.muli %c0_i32, %c2_i32 : i32
    %14 = arith.index_cast %13 : i32 to index
    %c0_14 = arith.constant 0 : index
    %15 = vector.load %arg13[%14, %c0_14] : memref<16x256xf32, #tpu.memory_space<vmem>>, vector<2x256xf32>
    %cst_15 = arith.constant dense<0.000000e+00> : vector<2x256xf32>
    %16 = tpu.matmul %12, %0, %cst_15 {dimension_numbers = #tpu.dot_dimension_numbers<[1], [0], [0], [1], [0, 0, 1, 1], [], []>} : vector<2x64xf32>, vector<64x256xf32>, vector<2x256xf32> -> vector<2x256xf32>
    %17 = arith.addf %15, %16 : vector<2x256xf32>
    %18 = vector.extract_strided_slice %17 {offsets = [0, 0], sizes = [2, 192], strides = [1, 1]} : vector<2x256xf32> to vector<2x192xf32>
    %19 = arith.negf %18 : vector<2x192xf32>
    %20 = math.exp %19 : vector<2x192xf32>
    %cst_16 = arith.constant 1.000000e+00 : f32
    %21 = vector.broadcast %cst_16 : f32 to vector<2x192xf32>
    %22 = arith.addf %21, %20 : vector<2x192xf32>
    %23 = arith.divf %21, %22 : vector<2x192xf32>
    %24 = vector.extract_strided_slice %23 {offsets = [0, 0], sizes = [2, 64], strides = [1, 1]} : vector<2x192xf32> to vector<2x64xf32>
    %25 = vector.extract_strided_slice %23 {offsets = [0, 64], sizes = [2, 64], strides = [1, 1]} : vector<2x192xf32> to vector<2x64xf32>
    %26 = vector.extract_strided_slice %23 {offsets = [0, 128], sizes = [2, 64], strides = [1, 1]} : vector<2x192xf32> to vector<2x64xf32>
    %27 = vector.extract_strided_slice %17 {offsets = [0, 192], sizes = [2, 64], strides = [1, 1]} : vector<2x256xf32> to vector<2x64xf32>
    %28 = math.tanh %27 : vector<2x64xf32>
    %29 = arith.mulf %25, %12 : vector<2x64xf32>
    %30 = arith.mulf %24, %28 : vector<2x64xf32>
    %31 = arith.addf %29, %30 : vector<2x64xf32>
    %32 = math.tanh %31 : vector<2x64xf32>
    %33 = arith.mulf %26, %32 : vector<2x64xf32>
    %34 = tpu.concatenate %33, %12 in 1 : vector<2x64xf32>, vector<2x64xf32> -> vector<2x128xf32>
    %cst_17 = arith.constant dense<0.000000e+00> : vector<2x256xf32>
    %35 = tpu.matmul %34, %1, %cst_17 {dimension_numbers = #tpu.dot_dimension_numbers<[1], [0], [0], [1], [0, 0, 1, 1], [], []>} : vector<2x128xf32>, vector<128x256xf32>, vector<2x256xf32> -> vector<2x256xf32>
    %36 = arith.addf %35, %4 : vector<2x256xf32>
    %37 = vector.extract_strided_slice %36 {offsets = [0, 0], sizes = [2, 192], strides = [1, 1]} : vector<2x256xf32> to vector<2x192xf32>
    %38 = arith.negf %37 : vector<2x192xf32>
    %39 = math.exp %38 : vector<2x192xf32>
    %cst_18 = arith.constant 1.000000e+00 : f32
    %40 = vector.broadcast %cst_18 : f32 to vector<2x192xf32>
    %41 = arith.addf %40, %39 : vector<2x192xf32>
    %42 = arith.divf %40, %41 : vector<2x192xf32>
    %43 = vector.extract_strided_slice %42 {offsets = [0, 0], sizes = [2, 64], strides = [1, 1]} : vector<2x192xf32> to vector<2x64xf32>
    %44 = vector.extract_strided_slice %42 {offsets = [0, 64], sizes = [2, 64], strides = [1, 1]} : vector<2x192xf32> to vector<2x64xf32>
    %45 = vector.extract_strided_slice %42 {offsets = [0, 128], sizes = [2, 64], strides = [1, 1]} : vector<2x192xf32> to vector<2x64xf32>
    %46 = vector.extract_strided_slice %36 {offsets = [0, 192], sizes = [2, 64], strides = [1, 1]} : vector<2x256xf32> to vector<2x64xf32>
    %47 = math.tanh %46 : vector<2x64xf32>
    %48 = arith.mulf %44, %12 : vector<2x64xf32>
    %49 = arith.mulf %43, %47 : vector<2x64xf32>
    %50 = arith.addf %48, %49 : vector<2x64xf32>
    %51 = math.tanh %50 : vector<2x64xf32>
    %52 = arith.mulf %45, %51 : vector<2x64xf32>
    %c1_i32 = arith.constant 1 : i32
    %c2_i32_19 = arith.constant 2 : i32
    %53 = arith.muli %c1_i32, %c2_i32_19 : i32
    %54 = arith.index_cast %53 : i32 to index
    %c0_20 = arith.constant 0 : index
    %55 = vector.load %arg13[%54, %c0_20] : memref<16x256xf32, #tpu.memory_space<vmem>>, vector<2x256xf32>
    %cst_21 = arith.constant dense<0.000000e+00> : vector<2x256xf32>
    %56 = tpu.matmul %33, %0, %cst_21 {dimension_numbers = #tpu.dot_dimension_numbers<[1], [0], [0], [1], [0, 0, 1, 1], [], []>} : vector<2x64xf32>, vector<64x256xf32>, vector<2x256xf32> -> vector<2x256xf32>
    %57 = arith.addf %55, %56 : vector<2x256xf32>
    %58 = vector.extract_strided_slice %57 {offsets = [0, 0], sizes = [2, 192], strides = [1, 1]} : vector<2x256xf32> to vector<2x192xf32>
    %59 = arith.negf %58 : vector<2x192xf32>
    %60 = math.exp %59 : vector<2x192xf32>
    %cst_22 = arith.constant 1.000000e+00 : f32
    %61 = vector.broadcast %cst_22 : f32 to vector<2x192xf32>
    %62 = arith.addf %61, %60 : vector<2x192xf32>
    %63 = arith.divf %61, %62 : vector<2x192xf32>
    %64 = vector.extract_strided_slice %63 {offsets = [0, 0], sizes = [2, 64], strides = [1, 1]} : vector<2x192xf32> to vector<2x64xf32>
    %65 = vector.extract_strided_slice %63 {offsets = [0, 64], sizes = [2, 64], strides = [1, 1]} : vector<2x192xf32> to vector<2x64xf32>
    %66 = vector.extract_strided_slice %63 {offsets = [0, 128], sizes = [2, 64], strides = [1, 1]} : vector<2x192xf32> to vector<2x64xf32>
    %67 = vector.extract_strided_slice %57 {offsets = [0, 192], sizes = [2, 64], strides = [1, 1]} : vector<2x256xf32> to vector<2x64xf32>
    %68 = math.tanh %67 : vector<2x64xf32>
    %69 = arith.mulf %65, %31 : vector<2x64xf32>
    %70 = arith.mulf %64, %68 : vector<2x64xf32>
    %71 = arith.addf %69, %70 : vector<2x64xf32>
    %72 = math.tanh %71 : vector<2x64xf32>
    %73 = arith.mulf %66, %72 : vector<2x64xf32>
    %74 = tpu.concatenate %73, %52 in 1 : vector<2x64xf32>, vector<2x64xf32> -> vector<2x128xf32>
    %cst_23 = arith.constant dense<0.000000e+00> : vector<2x256xf32>
    %75 = tpu.matmul %74, %1, %cst_23 {dimension_numbers = #tpu.dot_dimension_numbers<[1], [0], [0], [1], [0, 0, 1, 1], [], []>} : vector<2x128xf32>, vector<128x256xf32>, vector<2x256xf32> -> vector<2x256xf32>
    %76 = arith.addf %75, %4 : vector<2x256xf32>
    %77 = vector.extract_strided_slice %76 {offsets = [0, 0], sizes = [2, 192], strides = [1, 1]} : vector<2x256xf32> to vector<2x192xf32>
    %78 = arith.negf %77 : vector<2x192xf32>
    %79 = math.exp %78 : vector<2x192xf32>
    %cst_24 = arith.constant 1.000000e+00 : f32
    %80 = vector.broadcast %cst_24 : f32 to vector<2x192xf32>
    %81 = arith.addf %80, %79 : vector<2x192xf32>
    %82 = arith.divf %80, %81 : vector<2x192xf32>
    %83 = vector.extract_strided_slice %82 {offsets = [0, 0], sizes = [2, 64], strides = [1, 1]} : vector<2x192xf32> to vector<2x64xf32>
    %84 = vector.extract_strided_slice %82 {offsets = [0, 64], sizes = [2, 64], strides = [1, 1]} : vector<2x192xf32> to vector<2x64xf32>
    %85 = vector.extract_strided_slice %82 {offsets = [0, 128], sizes = [2, 64], strides = [1, 1]} : vector<2x192xf32> to vector<2x64xf32>
    %86 = vector.extract_strided_slice %76 {offsets = [0, 192], sizes = [2, 64], strides = [1, 1]} : vector<2x256xf32> to vector<2x64xf32>
    %87 = math.tanh %86 : vector<2x64xf32>
    %88 = arith.mulf %84, %50 : vector<2x64xf32>
    %89 = arith.mulf %83, %87 : vector<2x64xf32>
    %90 = arith.addf %88, %89 : vector<2x64xf32>
    %91 = math.tanh %90 : vector<2x64xf32>
    %92 = arith.mulf %85, %91 : vector<2x64xf32>
    %c2_i32_25 = arith.constant 2 : i32
    %c2_i32_26 = arith.constant 2 : i32
    %93 = arith.muli %c2_i32_25, %c2_i32_26 : i32
    %94 = arith.index_cast %93 : i32 to index
    %c0_27 = arith.constant 0 : index
    %95 = vector.load %arg13[%94, %c0_27] : memref<16x256xf32, #tpu.memory_space<vmem>>, vector<2x256xf32>
    %cst_28 = arith.constant dense<0.000000e+00> : vector<2x256xf32>
    %96 = tpu.matmul %73, %0, %cst_28 {dimension_numbers = #tpu.dot_dimension_numbers<[1], [0], [0], [1], [0, 0, 1, 1], [], []>} : vector<2x64xf32>, vector<64x256xf32>, vector<2x256xf32> -> vector<2x256xf32>
    %97 = arith.addf %95, %96 : vector<2x256xf32>
    %98 = vector.extract_strided_slice %97 {offsets = [0, 0], sizes = [2, 192], strides = [1, 1]} : vector<2x256xf32> to vector<2x192xf32>
    %99 = arith.negf %98 : vector<2x192xf32>
    %100 = math.exp %99 : vector<2x192xf32>
    %cst_29 = arith.constant 1.000000e+00 : f32
    %101 = vector.broadcast %cst_29 : f32 to vector<2x192xf32>
    %102 = arith.addf %101, %100 : vector<2x192xf32>
    %103 = arith.divf %101, %102 : vector<2x192xf32>
    %104 = vector.extract_strided_slice %103 {offsets = [0, 0], sizes = [2, 64], strides = [1, 1]} : vector<2x192xf32> to vector<2x64xf32>
    %105 = vector.extract_strided_slice %103 {offsets = [0, 64], sizes = [2, 64], strides = [1, 1]} : vector<2x192xf32> to vector<2x64xf32>
    %106 = vector.extract_strided_slice %103 {offsets = [0, 128], sizes = [2, 64], strides = [1, 1]} : vector<2x192xf32> to vector<2x64xf32>
    %107 = vector.extract_strided_slice %97 {offsets = [0, 192], sizes = [2, 64], strides = [1, 1]} : vector<2x256xf32> to vector<2x64xf32>
    %108 = math.tanh %107 : vector<2x64xf32>
    %109 = arith.mulf %105, %71 : vector<2x64xf32>
    %110 = arith.mulf %104, %108 : vector<2x64xf32>
    %111 = arith.addf %109, %110 : vector<2x64xf32>
    %112 = math.tanh %111 : vector<2x64xf32>
    %113 = arith.mulf %106, %112 : vector<2x64xf32>
    %114 = tpu.concatenate %113, %92 in 1 : vector<2x64xf32>, vector<2x64xf32> -> vector<2x128xf32>
    %cst_30 = arith.constant dense<0.000000e+00> : vector<2x256xf32>
    %115 = tpu.matmul %114, %1, %cst_30 {dimension_numbers = #tpu.dot_dimension_numbers<[1], [0], [0], [1], [0, 0, 1, 1], [], []>} : vector<2x128xf32>, vector<128x256xf32>, vector<2x256xf32> -> vector<2x256xf32>
    %116 = arith.addf %115, %4 : vector<2x256xf32>
    %117 = vector.extract_strided_slice %116 {offsets = [0, 0], sizes = [2, 192], strides = [1, 1]} : vector<2x256xf32> to vector<2x192xf32>
    %118 = arith.negf %117 : vector<2x192xf32>
    %119 = math.exp %118 : vector<2x192xf32>
    %cst_31 = arith.constant 1.000000e+00 : f32
    %120 = vector.broadcast %cst_31 : f32 to vector<2x192xf32>
    %121 = arith.addf %120, %119 : vector<2x192xf32>
    %122 = arith.divf %120, %121 : vector<2x192xf32>
    %123 = vector.extract_strided_slice %122 {offsets = [0, 0], sizes = [2, 64], strides = [1, 1]} : vector<2x192xf32> to vector<2x64xf32>
    %124 = vector.extract_strided_slice %122 {offsets = [0, 64], sizes = [2, 64], strides = [1, 1]} : vector<2x192xf32> to vector<2x64xf32>
    %125 = vector.extract_strided_slice %122 {offsets = [0, 128], sizes = [2, 64], strides = [1, 1]} : vector<2x192xf32> to vector<2x64xf32>
    %126 = vector.extract_strided_slice %116 {offsets = [0, 192], sizes = [2, 64], strides = [1, 1]} : vector<2x256xf32> to vector<2x64xf32>
    %127 = math.tanh %126 : vector<2x64xf32>
    %128 = arith.mulf %124, %90 : vector<2x64xf32>
    %129 = arith.mulf %123, %127 : vector<2x64xf32>
    %130 = arith.addf %128, %129 : vector<2x64xf32>
    %131 = math.tanh %130 : vector<2x64xf32>
    %132 = arith.mulf %125, %131 : vector<2x64xf32>
    %c3_i32 = arith.constant 3 : i32
    %c2_i32_32 = arith.constant 2 : i32
    %133 = arith.muli %c3_i32, %c2_i32_32 : i32
    %134 = arith.index_cast %133 : i32 to index
    %c0_33 = arith.constant 0 : index
    %135 = vector.load %arg13[%134, %c0_33] : memref<16x256xf32, #tpu.memory_space<vmem>>, vector<2x256xf32>
    %cst_34 = arith.constant dense<0.000000e+00> : vector<2x256xf32>
    %136 = tpu.matmul %113, %0, %cst_34 {dimension_numbers = #tpu.dot_dimension_numbers<[1], [0], [0], [1], [0, 0, 1, 1], [], []>} : vector<2x64xf32>, vector<64x256xf32>, vector<2x256xf32> -> vector<2x256xf32>
    %137 = arith.addf %135, %136 : vector<2x256xf32>
    %138 = vector.extract_strided_slice %137 {offsets = [0, 0], sizes = [2, 192], strides = [1, 1]} : vector<2x256xf32> to vector<2x192xf32>
    %139 = arith.negf %138 : vector<2x192xf32>
    %140 = math.exp %139 : vector<2x192xf32>
    %cst_35 = arith.constant 1.000000e+00 : f32
    %141 = vector.broadcast %cst_35 : f32 to vector<2x192xf32>
    %142 = arith.addf %141, %140 : vector<2x192xf32>
    %143 = arith.divf %141, %142 : vector<2x192xf32>
    %144 = vector.extract_strided_slice %143 {offsets = [0, 0], sizes = [2, 64], strides = [1, 1]} : vector<2x192xf32> to vector<2x64xf32>
    %145 = vector.extract_strided_slice %143 {offsets = [0, 64], sizes = [2, 64], strides = [1, 1]} : vector<2x192xf32> to vector<2x64xf32>
    %146 = vector.extract_strided_slice %143 {offsets = [0, 128], sizes = [2, 64], strides = [1, 1]} : vector<2x192xf32> to vector<2x64xf32>
    %147 = vector.extract_strided_slice %137 {offsets = [0, 192], sizes = [2, 64], strides = [1, 1]} : vector<2x256xf32> to vector<2x64xf32>
    %148 = math.tanh %147 : vector<2x64xf32>
    %149 = arith.mulf %145, %111 : vector<2x64xf32>
    %150 = arith.mulf %144, %148 : vector<2x64xf32>
    %151 = arith.addf %149, %150 : vector<2x64xf32>
    %152 = math.tanh %151 : vector<2x64xf32>
    %153 = arith.mulf %146, %152 : vector<2x64xf32>
    %154 = tpu.concatenate %153, %132 in 1 : vector<2x64xf32>, vector<2x64xf32> -> vector<2x128xf32>
    %cst_36 = arith.constant dense<0.000000e+00> : vector<2x256xf32>
    %155 = tpu.matmul %154, %1, %cst_36 {dimension_numbers = #tpu.dot_dimension_numbers<[1], [0], [0], [1], [0, 0, 1, 1], [], []>} : vector<2x128xf32>, vector<128x256xf32>, vector<2x256xf32> -> vector<2x256xf32>
    %156 = arith.addf %155, %4 : vector<2x256xf32>
    %157 = vector.extract_strided_slice %156 {offsets = [0, 0], sizes = [2, 192], strides = [1, 1]} : vector<2x256xf32> to vector<2x192xf32>
    %158 = arith.negf %157 : vector<2x192xf32>
    %159 = math.exp %158 : vector<2x192xf32>
    %cst_37 = arith.constant 1.000000e+00 : f32
    %160 = vector.broadcast %cst_37 : f32 to vector<2x192xf32>
    %161 = arith.addf %160, %159 : vector<2x192xf32>
    %162 = arith.divf %160, %161 : vector<2x192xf32>
    %163 = vector.extract_strided_slice %162 {offsets = [0, 0], sizes = [2, 64], strides = [1, 1]} : vector<2x192xf32> to vector<2x64xf32>
    %164 = vector.extract_strided_slice %162 {offsets = [0, 64], sizes = [2, 64], strides = [1, 1]} : vector<2x192xf32> to vector<2x64xf32>
    %165 = vector.extract_strided_slice %162 {offsets = [0, 128], sizes = [2, 64], strides = [1, 1]} : vector<2x192xf32> to vector<2x64xf32>
    %166 = vector.extract_strided_slice %156 {offsets = [0, 192], sizes = [2, 64], strides = [1, 1]} : vector<2x256xf32> to vector<2x64xf32>
    %167 = math.tanh %166 : vector<2x64xf32>
    %168 = arith.mulf %164, %130 : vector<2x64xf32>
    %169 = arith.mulf %163, %167 : vector<2x64xf32>
    %170 = arith.addf %168, %169 : vector<2x64xf32>
    %171 = math.tanh %170 : vector<2x64xf32>
    %172 = arith.mulf %165, %171 : vector<2x64xf32>
    %c4_i32 = arith.constant 4 : i32
    %c2_i32_38 = arith.constant 2 : i32
    %173 = arith.muli %c4_i32, %c2_i32_38 : i32
    %174 = arith.index_cast %173 : i32 to index
    %c0_39 = arith.constant 0 : index
    %175 = vector.load %arg13[%174, %c0_39] : memref<16x256xf32, #tpu.memory_space<vmem>>, vector<2x256xf32>
    %cst_40 = arith.constant dense<0.000000e+00> : vector<2x256xf32>
    %176 = tpu.matmul %153, %0, %cst_40 {dimension_numbers = #tpu.dot_dimension_numbers<[1], [0], [0], [1], [0, 0, 1, 1], [], []>} : vector<2x64xf32>, vector<64x256xf32>, vector<2x256xf32> -> vector<2x256xf32>
    %177 = arith.addf %175, %176 : vector<2x256xf32>
    %178 = vector.extract_strided_slice %177 {offsets = [0, 0], sizes = [2, 192], strides = [1, 1]} : vector<2x256xf32> to vector<2x192xf32>
    %179 = arith.negf %178 : vector<2x192xf32>
    %180 = math.exp %179 : vector<2x192xf32>
    %cst_41 = arith.constant 1.000000e+00 : f32
    %181 = vector.broadcast %cst_41 : f32 to vector<2x192xf32>
    %182 = arith.addf %181, %180 : vector<2x192xf32>
    %183 = arith.divf %181, %182 : vector<2x192xf32>
    %184 = vector.extract_strided_slice %183 {offsets = [0, 0], sizes = [2, 64], strides = [1, 1]} : vector<2x192xf32> to vector<2x64xf32>
    %185 = vector.extract_strided_slice %183 {offsets = [0, 64], sizes = [2, 64], strides = [1, 1]} : vector<2x192xf32> to vector<2x64xf32>
    %186 = vector.extract_strided_slice %183 {offsets = [0, 128], sizes = [2, 64], strides = [1, 1]} : vector<2x192xf32> to vector<2x64xf32>
    %187 = vector.extract_strided_slice %177 {offsets = [0, 192], sizes = [2, 64], strides = [1, 1]} : vector<2x256xf32> to vector<2x64xf32>
    %188 = math.tanh %187 : vector<2x64xf32>
    %189 = arith.mulf %185, %151 : vector<2x64xf32>
    %190 = arith.mulf %184, %188 : vector<2x64xf32>
    %191 = arith.addf %189, %190 : vector<2x64xf32>
    %192 = math.tanh %191 : vector<2x64xf32>
    %193 = arith.mulf %186, %192 : vector<2x64xf32>
    %194 = tpu.concatenate %193, %172 in 1 : vector<2x64xf32>, vector<2x64xf32> -> vector<2x128xf32>
    %cst_42 = arith.constant dense<0.000000e+00> : vector<2x256xf32>
    %195 = tpu.matmul %194, %1, %cst_42 {dimension_numbers = #tpu.dot_dimension_numbers<[1], [0], [0], [1], [0, 0, 1, 1], [], []>} : vector<2x128xf32>, vector<128x256xf32>, vector<2x256xf32> -> vector<2x256xf32>
    %196 = arith.addf %195, %4 : vector<2x256xf32>
    %197 = vector.extract_strided_slice %196 {offsets = [0, 0], sizes = [2, 192], strides = [1, 1]} : vector<2x256xf32> to vector<2x192xf32>
    %198 = arith.negf %197 : vector<2x192xf32>
    %199 = math.exp %198 : vector<2x192xf32>
    %cst_43 = arith.constant 1.000000e+00 : f32
    %200 = vector.broadcast %cst_43 : f32 to vector<2x192xf32>
    %201 = arith.addf %200, %199 : vector<2x192xf32>
    %202 = arith.divf %200, %201 : vector<2x192xf32>
    %203 = vector.extract_strided_slice %202 {offsets = [0, 0], sizes = [2, 64], strides = [1, 1]} : vector<2x192xf32> to vector<2x64xf32>
    %204 = vector.extract_strided_slice %202 {offsets = [0, 64], sizes = [2, 64], strides = [1, 1]} : vector<2x192xf32> to vector<2x64xf32>
    %205 = vector.extract_strided_slice %202 {offsets = [0, 128], sizes = [2, 64], strides = [1, 1]} : vector<2x192xf32> to vector<2x64xf32>
    %206 = vector.extract_strided_slice %196 {offsets = [0, 192], sizes = [2, 64], strides = [1, 1]} : vector<2x256xf32> to vector<2x64xf32>
    %207 = math.tanh %206 : vector<2x64xf32>
    %208 = arith.mulf %204, %170 : vector<2x64xf32>
    %209 = arith.mulf %203, %207 : vector<2x64xf32>
    %210 = arith.addf %208, %209 : vector<2x64xf32>
    %211 = math.tanh %210 : vector<2x64xf32>
    %212 = arith.mulf %205, %211 : vector<2x64xf32>
    %c5_i32 = arith.constant 5 : i32
    %c2_i32_44 = arith.constant 2 : i32
    %213 = arith.muli %c5_i32, %c2_i32_44 : i32
    %214 = arith.index_cast %213 : i32 to index
    %c0_45 = arith.constant 0 : index
    %215 = vector.load %arg13[%214, %c0_45] : memref<16x256xf32, #tpu.memory_space<vmem>>, vector<2x256xf32>
    %cst_46 = arith.constant dense<0.000000e+00> : vector<2x256xf32>
    %216 = tpu.matmul %193, %0, %cst_46 {dimension_numbers = #tpu.dot_dimension_numbers<[1], [0], [0], [1], [0, 0, 1, 1], [], []>} : vector<2x64xf32>, vector<64x256xf32>, vector<2x256xf32> -> vector<2x256xf32>
    %217 = arith.addf %215, %216 : vector<2x256xf32>
    %218 = vector.extract_strided_slice %217 {offsets = [0, 0], sizes = [2, 192], strides = [1, 1]} : vector<2x256xf32> to vector<2x192xf32>
    %219 = arith.negf %218 : vector<2x192xf32>
    %220 = math.exp %219 : vector<2x192xf32>
    %cst_47 = arith.constant 1.000000e+00 : f32
    %221 = vector.broadcast %cst_47 : f32 to vector<2x192xf32>
    %222 = arith.addf %221, %220 : vector<2x192xf32>
    %223 = arith.divf %221, %222 : vector<2x192xf32>
    %224 = vector.extract_strided_slice %223 {offsets = [0, 0], sizes = [2, 64], strides = [1, 1]} : vector<2x192xf32> to vector<2x64xf32>
    %225 = vector.extract_strided_slice %223 {offsets = [0, 64], sizes = [2, 64], strides = [1, 1]} : vector<2x192xf32> to vector<2x64xf32>
    %226 = vector.extract_strided_slice %223 {offsets = [0, 128], sizes = [2, 64], strides = [1, 1]} : vector<2x192xf32> to vector<2x64xf32>
    %227 = vector.extract_strided_slice %217 {offsets = [0, 192], sizes = [2, 64], strides = [1, 1]} : vector<2x256xf32> to vector<2x64xf32>
    %228 = math.tanh %227 : vector<2x64xf32>
    %229 = arith.mulf %225, %191 : vector<2x64xf32>
    %230 = arith.mulf %224, %228 : vector<2x64xf32>
    %231 = arith.addf %229, %230 : vector<2x64xf32>
    %232 = math.tanh %231 : vector<2x64xf32>
    %233 = arith.mulf %226, %232 : vector<2x64xf32>
    %234 = tpu.concatenate %233, %212 in 1 : vector<2x64xf32>, vector<2x64xf32> -> vector<2x128xf32>
    %cst_48 = arith.constant dense<0.000000e+00> : vector<2x256xf32>
    %235 = tpu.matmul %234, %1, %cst_48 {dimension_numbers = #tpu.dot_dimension_numbers<[1], [0], [0], [1], [0, 0, 1, 1], [], []>} : vector<2x128xf32>, vector<128x256xf32>, vector<2x256xf32> -> vector<2x256xf32>
    %236 = arith.addf %235, %4 : vector<2x256xf32>
    %237 = vector.extract_strided_slice %236 {offsets = [0, 0], sizes = [2, 192], strides = [1, 1]} : vector<2x256xf32> to vector<2x192xf32>
    %238 = arith.negf %237 : vector<2x192xf32>
    %239 = math.exp %238 : vector<2x192xf32>
    %cst_49 = arith.constant 1.000000e+00 : f32
    %240 = vector.broadcast %cst_49 : f32 to vector<2x192xf32>
    %241 = arith.addf %240, %239 : vector<2x192xf32>
    %242 = arith.divf %240, %241 : vector<2x192xf32>
    %243 = vector.extract_strided_slice %242 {offsets = [0, 0], sizes = [2, 64], strides = [1, 1]} : vector<2x192xf32> to vector<2x64xf32>
    %244 = vector.extract_strided_slice %242 {offsets = [0, 64], sizes = [2, 64], strides = [1, 1]} : vector<2x192xf32> to vector<2x64xf32>
    %245 = vector.extract_strided_slice %242 {offsets = [0, 128], sizes = [2, 64], strides = [1, 1]} : vector<2x192xf32> to vector<2x64xf32>
    %246 = vector.extract_strided_slice %236 {offsets = [0, 192], sizes = [2, 64], strides = [1, 1]} : vector<2x256xf32> to vector<2x64xf32>
    %247 = math.tanh %246 : vector<2x64xf32>
    %248 = arith.mulf %244, %210 : vector<2x64xf32>
    %249 = arith.mulf %243, %247 : vector<2x64xf32>
    %250 = arith.addf %248, %249 : vector<2x64xf32>
    %251 = math.tanh %250 : vector<2x64xf32>
    %252 = arith.mulf %245, %251 : vector<2x64xf32>
    %c6_i32 = arith.constant 6 : i32
    %c2_i32_50 = arith.constant 2 : i32
    %253 = arith.muli %c6_i32, %c2_i32_50 : i32
    %254 = arith.index_cast %253 : i32 to index
    %c0_51 = arith.constant 0 : index
    %255 = vector.load %arg13[%254, %c0_51] : memref<16x256xf32, #tpu.memory_space<vmem>>, vector<2x256xf32>
    %cst_52 = arith.constant dense<0.000000e+00> : vector<2x256xf32>
    %256 = tpu.matmul %233, %0, %cst_52 {dimension_numbers = #tpu.dot_dimension_numbers<[1], [0], [0], [1], [0, 0, 1, 1], [], []>} : vector<2x64xf32>, vector<64x256xf32>, vector<2x256xf32> -> vector<2x256xf32>
    %257 = arith.addf %255, %256 : vector<2x256xf32>
    %258 = vector.extract_strided_slice %257 {offsets = [0, 0], sizes = [2, 192], strides = [1, 1]} : vector<2x256xf32> to vector<2x192xf32>
    %259 = arith.negf %258 : vector<2x192xf32>
    %260 = math.exp %259 : vector<2x192xf32>
    %cst_53 = arith.constant 1.000000e+00 : f32
    %261 = vector.broadcast %cst_53 : f32 to vector<2x192xf32>
    %262 = arith.addf %261, %260 : vector<2x192xf32>
    %263 = arith.divf %261, %262 : vector<2x192xf32>
    %264 = vector.extract_strided_slice %263 {offsets = [0, 0], sizes = [2, 64], strides = [1, 1]} : vector<2x192xf32> to vector<2x64xf32>
    %265 = vector.extract_strided_slice %263 {offsets = [0, 64], sizes = [2, 64], strides = [1, 1]} : vector<2x192xf32> to vector<2x64xf32>
    %266 = vector.extract_strided_slice %263 {offsets = [0, 128], sizes = [2, 64], strides = [1, 1]} : vector<2x192xf32> to vector<2x64xf32>
    %267 = vector.extract_strided_slice %257 {offsets = [0, 192], sizes = [2, 64], strides = [1, 1]} : vector<2x256xf32> to vector<2x64xf32>
    %268 = math.tanh %267 : vector<2x64xf32>
    %269 = arith.mulf %265, %231 : vector<2x64xf32>
    %270 = arith.mulf %264, %268 : vector<2x64xf32>
    %271 = arith.addf %269, %270 : vector<2x64xf32>
    %272 = math.tanh %271 : vector<2x64xf32>
    %273 = arith.mulf %266, %272 : vector<2x64xf32>
    %274 = tpu.concatenate %273, %252 in 1 : vector<2x64xf32>, vector<2x64xf32> -> vector<2x128xf32>
    %cst_54 = arith.constant dense<0.000000e+00> : vector<2x256xf32>
    %275 = tpu.matmul %274, %1, %cst_54 {dimension_numbers = #tpu.dot_dimension_numbers<[1], [0], [0], [1], [0, 0, 1, 1], [], []>} : vector<2x128xf32>, vector<128x256xf32>, vector<2x256xf32> -> vector<2x256xf32>
    %276 = arith.addf %275, %4 : vector<2x256xf32>
    %277 = vector.extract_strided_slice %276 {offsets = [0, 0], sizes = [2, 192], strides = [1, 1]} : vector<2x256xf32> to vector<2x192xf32>
    %278 = arith.negf %277 : vector<2x192xf32>
    %279 = math.exp %278 : vector<2x192xf32>
    %cst_55 = arith.constant 1.000000e+00 : f32
    %280 = vector.broadcast %cst_55 : f32 to vector<2x192xf32>
    %281 = arith.addf %280, %279 : vector<2x192xf32>
    %282 = arith.divf %280, %281 : vector<2x192xf32>
    %283 = vector.extract_strided_slice %282 {offsets = [0, 0], sizes = [2, 64], strides = [1, 1]} : vector<2x192xf32> to vector<2x64xf32>
    %284 = vector.extract_strided_slice %282 {offsets = [0, 64], sizes = [2, 64], strides = [1, 1]} : vector<2x192xf32> to vector<2x64xf32>
    %285 = vector.extract_strided_slice %282 {offsets = [0, 128], sizes = [2, 64], strides = [1, 1]} : vector<2x192xf32> to vector<2x64xf32>
    %286 = vector.extract_strided_slice %276 {offsets = [0, 192], sizes = [2, 64], strides = [1, 1]} : vector<2x256xf32> to vector<2x64xf32>
    %287 = math.tanh %286 : vector<2x64xf32>
    %288 = arith.mulf %284, %250 : vector<2x64xf32>
    %289 = arith.mulf %283, %287 : vector<2x64xf32>
    %290 = arith.addf %288, %289 : vector<2x64xf32>
    %291 = math.tanh %290 : vector<2x64xf32>
    %292 = arith.mulf %285, %291 : vector<2x64xf32>
    %c7_i32 = arith.constant 7 : i32
    %c2_i32_56 = arith.constant 2 : i32
    %293 = arith.muli %c7_i32, %c2_i32_56 : i32
    %294 = arith.index_cast %293 : i32 to index
    %c0_57 = arith.constant 0 : index
    %295 = vector.load %arg13[%294, %c0_57] : memref<16x256xf32, #tpu.memory_space<vmem>>, vector<2x256xf32>
    %cst_58 = arith.constant dense<0.000000e+00> : vector<2x256xf32>
    %296 = tpu.matmul %273, %0, %cst_58 {dimension_numbers = #tpu.dot_dimension_numbers<[1], [0], [0], [1], [0, 0, 1, 1], [], []>} : vector<2x64xf32>, vector<64x256xf32>, vector<2x256xf32> -> vector<2x256xf32>
    %297 = arith.addf %295, %296 : vector<2x256xf32>
    %298 = vector.extract_strided_slice %297 {offsets = [0, 0], sizes = [2, 192], strides = [1, 1]} : vector<2x256xf32> to vector<2x192xf32>
    %299 = arith.negf %298 : vector<2x192xf32>
    %300 = math.exp %299 : vector<2x192xf32>
    %cst_59 = arith.constant 1.000000e+00 : f32
    %301 = vector.broadcast %cst_59 : f32 to vector<2x192xf32>
    %302 = arith.addf %301, %300 : vector<2x192xf32>
    %303 = arith.divf %301, %302 : vector<2x192xf32>
    %304 = vector.extract_strided_slice %303 {offsets = [0, 0], sizes = [2, 64], strides = [1, 1]} : vector<2x192xf32> to vector<2x64xf32>
    %305 = vector.extract_strided_slice %303 {offsets = [0, 64], sizes = [2, 64], strides = [1, 1]} : vector<2x192xf32> to vector<2x64xf32>
    %306 = vector.extract_strided_slice %303 {offsets = [0, 128], sizes = [2, 64], strides = [1, 1]} : vector<2x192xf32> to vector<2x64xf32>
    %307 = vector.extract_strided_slice %297 {offsets = [0, 192], sizes = [2, 64], strides = [1, 1]} : vector<2x256xf32> to vector<2x64xf32>
    %308 = math.tanh %307 : vector<2x64xf32>
    %309 = arith.mulf %305, %271 : vector<2x64xf32>
    %310 = arith.mulf %304, %308 : vector<2x64xf32>
    %311 = arith.addf %309, %310 : vector<2x64xf32>
    %312 = math.tanh %311 : vector<2x64xf32>
    %313 = arith.mulf %306, %312 : vector<2x64xf32>
    %314 = tpu.concatenate %313, %292 in 1 : vector<2x64xf32>, vector<2x64xf32> -> vector<2x128xf32>
    %cst_60 = arith.constant dense<0.000000e+00> : vector<2x256xf32>
    %315 = tpu.matmul %314, %1, %cst_60 {dimension_numbers = #tpu.dot_dimension_numbers<[1], [0], [0], [1], [0, 0, 1, 1], [], []>} : vector<2x128xf32>, vector<128x256xf32>, vector<2x256xf32> -> vector<2x256xf32>
    %316 = arith.addf %315, %4 : vector<2x256xf32>
    %317 = vector.extract_strided_slice %316 {offsets = [0, 0], sizes = [2, 192], strides = [1, 1]} : vector<2x256xf32> to vector<2x192xf32>
    %318 = arith.negf %317 : vector<2x192xf32>
    %319 = math.exp %318 : vector<2x192xf32>
    %cst_61 = arith.constant 1.000000e+00 : f32
    %320 = vector.broadcast %cst_61 : f32 to vector<2x192xf32>
    %321 = arith.addf %320, %319 : vector<2x192xf32>
    %322 = arith.divf %320, %321 : vector<2x192xf32>
    %323 = vector.extract_strided_slice %322 {offsets = [0, 0], sizes = [2, 64], strides = [1, 1]} : vector<2x192xf32> to vector<2x64xf32>
    %324 = vector.extract_strided_slice %322 {offsets = [0, 64], sizes = [2, 64], strides = [1, 1]} : vector<2x192xf32> to vector<2x64xf32>
    %325 = vector.extract_strided_slice %322 {offsets = [0, 128], sizes = [2, 64], strides = [1, 1]} : vector<2x192xf32> to vector<2x64xf32>
    %326 = vector.extract_strided_slice %316 {offsets = [0, 192], sizes = [2, 64], strides = [1, 1]} : vector<2x256xf32> to vector<2x64xf32>
    %327 = math.tanh %326 : vector<2x64xf32>
    %328 = arith.mulf %324, %290 : vector<2x64xf32>
    %329 = arith.mulf %323, %327 : vector<2x64xf32>
    %330 = arith.addf %328, %329 : vector<2x64xf32>
    %331 = math.tanh %330 : vector<2x64xf32>
    %332 = arith.mulf %325, %331 : vector<2x64xf32>
    %c8_i32 = arith.constant 8 : i32
    %c0_62 = arith.constant 0 : index
    %c0_63 = arith.constant 0 : index
    %333 = vector.load %arg6[%c0_62, %c0_63] : memref<64x32xf32, #tpu.memory_space<vmem>>, vector<64x32xf32>
    %cst_64 = arith.constant dense<0.000000e+00> : vector<2x32xf32>
    %334 = tpu.matmul %332, %333, %cst_64 {dimension_numbers = #tpu.dot_dimension_numbers<[1], [0], [0], [1], [0, 0, 1, 1], [], []>} : vector<2x64xf32>, vector<64x32xf32>, vector<2x32xf32> -> vector<2x32xf32>
    %c0_65 = arith.constant 0 : index
    %c0_66 = arith.constant 0 : index
    %335 = vector.load %arg7[%c0_65, %c0_66] : memref<1x32xf32, #tpu.memory_space<vmem>>, vector<1x32xf32>
    %336 = vector.broadcast %335 : vector<1x32xf32> to vector<2x32xf32>
    %337 = arith.addf %334, %336 : vector<2x32xf32>
    %cst_67 = arith.constant 0.000000e+00 : f32
    %338 = vector.broadcast %cst_67 : f32 to vector<2x32xf32>
    %339 = arith.maximumf %337, %338 : vector<2x32xf32>
    %c0_68 = arith.constant 0 : index
    %c0_69 = arith.constant 0 : index
    %340 = vector.load %arg8[%c0_68, %c0_69] : memref<32x16xf32, #tpu.memory_space<vmem>>, vector<32x16xf32>
    %cst_70 = arith.constant dense<0.000000e+00> : vector<2x16xf32>
    %341 = tpu.matmul %339, %340, %cst_70 {dimension_numbers = #tpu.dot_dimension_numbers<[1], [0], [0], [1], [0, 0, 1, 1], [], []>} : vector<2x32xf32>, vector<32x16xf32>, vector<2x16xf32> -> vector<2x16xf32>
    %c0_71 = arith.constant 0 : index
    %c0_72 = arith.constant 0 : index
    %342 = vector.load %arg9[%c0_71, %c0_72] : memref<1x16xf32, #tpu.memory_space<vmem>>, vector<1x16xf32>
    %343 = vector.broadcast %342 : vector<1x16xf32> to vector<2x16xf32>
    %344 = arith.addf %341, %343 : vector<2x16xf32>
    %cst_73 = arith.constant 0.000000e+00 : f32
    %345 = vector.broadcast %cst_73 : f32 to vector<2x16xf32>
    %346 = arith.maximumf %344, %345 : vector<2x16xf32>
    %c0_74 = arith.constant 0 : index
    %c0_75 = arith.constant 0 : index
    %347 = vector.load %arg10[%c0_74, %c0_75] : memref<16x3xf32, #tpu.memory_space<vmem>>, vector<16x3xf32>
    %cst_76 = arith.constant dense<0.000000e+00> : vector<2x3xf32>
    %348 = tpu.matmul %346, %347, %cst_76 {dimension_numbers = #tpu.dot_dimension_numbers<[1], [0], [0], [1], [0, 0, 1, 1], [], []>} : vector<2x16xf32>, vector<16x3xf32>, vector<2x3xf32> -> vector<2x3xf32>
    %c0_77 = arith.constant 0 : index
    %c0_78 = arith.constant 0 : index
    %349 = vector.load %arg11[%c0_77, %c0_78] : memref<1x3xf32, #tpu.memory_space<vmem>>, vector<1x3xf32>
    %350 = vector.broadcast %349 : vector<1x3xf32> to vector<2x3xf32>
    %351 = arith.addf %348, %350 : vector<2x3xf32>
    %c0_79 = arith.constant 0 : index
    %c0_80 = arith.constant 0 : index
    %352 = vector.load %arg12[%c0_79, %c0_80] : memref<2x3xf32, #tpu.memory_space<vmem>>, vector<2x3xf32>
    tpu.vector_store %arg12[%c0_79, %c0_80], %351 {strides = array<i32>} : memref<2x3xf32, #tpu.memory_space<vmem>>, vector<2x3xf32>,
    return
  }
}

</mosaic_0001>

<llo_original>
// kernel: tpu_custom_call.1
$region0: #{tpu_custom_call.1}
  #allocation0 [shape = 'u32[]', space=smem, size = 0x4, offset = 0x4, fixed_abs, tag = 'smem constant byte address 0x4 - core index']
  #allocation1 [shape = 'u32[144,128]{1,0:T(1,128)}', space=vmem, size = 0x12000, scoped, tag = 'internal scratch']
  #allocation2 [shape = 'f32[16,256]{1,0:T(8,128)}', space=vmem, size = 0x4000, scoped, tag = 'scratch operand']
  %s0 = inlined_call_operand.vmem [shape: f32[16,5], index: 0, kind: input, shape index: {}]
  %s1 = inlined_call_operand.vmem [shape: f32[5,256], index: 1, kind: input, shape index: {}]
  %s2 = inlined_call_operand.vmem [shape: f32[64,256], index: 2, kind: input, shape index: {}]
  %s3 = inlined_call_operand.vmem [shape: f32[1,256], index: 3, kind: input, shape index: {}]
  %s4 = inlined_call_operand.hbm [shape: f32[128,256], index: 4, kind: input, shape index: {}]
  %s5 = inlined_call_operand.vmem [shape: f32[1,256], index: 5, kind: input, shape index: {}]
  %s6 = inlined_call_operand.vmem [shape: f32[64,32], index: 6, kind: input, shape index: {}]
  %s7 = inlined_call_operand.vmem [shape: f32[1,32], index: 7, kind: input, shape index: {}]
  %s8 = inlined_call_operand.vmem [shape: f32[32,16], index: 8, kind: input, shape index: {}]
  %s9 = inlined_call_operand.vmem [shape: f32[1,16], index: 9, kind: input, shape index: {}]
  %s10 = inlined_call_operand.vmem [shape: f32[16,3], index: 10, kind: input, shape index: {}]
  %s11 = inlined_call_operand.vmem [shape: f32[1,3], index: 11, kind: input, shape index: {}]
  %s12 = inlined_call_operand.hbm [shape: f32[2,3], index: 12, kind: output, shape index: {}]
  %s13 = sld [smem:[#allocation0]]
  $region62: #{tpu_custom_call.1} parent=0
    _
  %s15 = ssub.s32 1, %s13
  %s16 = scalar_select 0, %s15, %s13
  $region1: #{tpu_custom_call.1} parent=0
    #allocation3 [shape = 'u8[131072]{0}', space=vmem, size = 0x20000, scoped, tag = 'input window, operand 4, single buffered']
    #allocation4 [shape = 's32[1]{0}', space=sflag, size = 0x4, scoped, tag = 'scoped memory for tpu_custom_call.1']
    #allocation5 [shape = 's32[1]{0}', space=sflag, size = 0x4, scoped, tag = 'scoped memory for tpu_custom_call.1']
    #allocation6 [shape = 'u8[1024]{0}', space=vmem, size = 0x400, scoped, tag = 'output window, operand 0, single buffered']
    %17 = vsyncpa [#allocation4], 0
    %18 = vsyncpa [#allocation5], 0
    // Predicated region
    $region2: #{tpu_custom_call.1} parent=1 // pred_check
      _
    $region3: #{tpu_custom_call.1} parent=1 // pred_check_branch
      %20 = sbr.rel (0) target = $region5
    $region4: #{tpu_custom_call.1} parent=1 // pred_region
      _
    $region5: #{tpu_custom_call.1} parent=1 // pred_fallthru
      _
    // Predicated region
    $region6: #{tpu_custom_call.1} parent=1 // pred_check
      _
    $region7: #{tpu_custom_call.1} parent=1 // pred_check_branch
      %22 = sbr.rel (0) target = $region9
    $region8: #{tpu_custom_call.1} parent=1 // pred_region
      _
    $region9: #{tpu_custom_call.1} parent=1 // pred_fallthru
      _
    // Predicated region
    $region10: #{tpu_custom_call.1} parent=1 // pred_check
      _
    $region11: #{tpu_custom_call.1} parent=1 // pred_check_branch
      %24 = sbr.rel (0) target = $region13
    $region12: #{tpu_custom_call.1} parent=1 // pred_region
      _
    $region13: #{tpu_custom_call.1} parent=1 // pred_fallthru
      _
    // Predicated region
    $region14: #{tpu_custom_call.1} parent=1 // pred_check
      _
    $region15: #{tpu_custom_call.1} parent=1 // pred_check_branch
      %26 = sbr.rel (0) target = $region17
    $region16: #{tpu_custom_call.1} parent=1 // pred_region
      _
    $region17: #{tpu_custom_call.1} parent=1 // pred_fallthru
      _
    // Predicated region
    $region18: #{tpu_custom_call.1} parent=1 // pred_check
      _
    $region19: #{tpu_custom_call.1} parent=1 // pred_check_branch
      %28 = sbr.rel (0) target = $region21
    $region20: #{tpu_custom_call.1} parent=1 // pred_region
      %s30 = ssub.s32 4096, 4096
      %31 = vsyncadd [#allocation4], %s30
      %s32 = sshll.u32 [#allocation3], 4
      %s33 = int_to_ptr.vmem [resolvable:$true] %s32
      %38 = dma.hbm_to_vmem [thread:$0]  %s4, 4096, %s33, [#allocation4], 256, 256, 16
    $region21: #{tpu_custom_call.1} parent=1 // pred_fallthru
      _
    // Predicated region
    $region22: #{tpu_custom_call.1} parent=1 // pred_check
      _
    $region23: #{tpu_custom_call.1} parent=1 // pred_check_branch
      %40 = sbr.rel (0) target = $region25
    $region24: #{tpu_custom_call.1} parent=1 // pred_region
      _
    $region25: #{tpu_custom_call.1} parent=1 // pred_fallthru
      _
    // Predicated region
    $region26: #{tpu_custom_call.1} parent=1 // pred_check
      _
    $region27: #{tpu_custom_call.1} parent=1 // pred_check_branch
      %42 = sbr.rel (0) target = $region29
    $region28: #{tpu_custom_call.1} parent=1 // pred_region
      _
    $region29: #{tpu_custom_call.1} parent=1 // pred_fallthru
      _
    // Predicated region
    $region30: #{tpu_custom_call.1} parent=1 // pred_check
      _
    $region31: #{tpu_custom_call.1} parent=1 // pred_check_branch
      %44 = sbr.rel (0) target = $region33
    $region32: #{tpu_custom_call.1} parent=1 // pred_region
      _
    $region33: #{tpu_custom_call.1} parent=1 // pred_fallthru
      _
    // Predicated region
    $region34: #{tpu_custom_call.1} parent=1 // pred_check
      _
    $region35: #{tpu_custom_call.1} parent=1 // pred_check_branch
      %46 = sbr.rel (0) target = $region37
    $region36: #{tpu_custom_call.1} parent=1 // pred_region
      _
    $region37: #{tpu_custom_call.1} parent=1 // pred_fallthru
      _
    // Predicated region
    $region38: #{tpu_custom_call.1} parent=1 // pred_check
      _
    $region39: #{tpu_custom_call.1} parent=1 // pred_check_branch
      %48 = sbr.rel (0) target = $region41
    $region40: #{tpu_custom_call.1} parent=1 // pred_region
      _
    $region41: #{tpu_custom_call.1} parent=1 // pred_fallthru
      _
    // Predicated region
    $region42: #{tpu_custom_call.1} parent=1 // pred_check
      _
    $region43: #{tpu_custom_call.1} parent=1 // pred_check_branch
      %50 = sbr.rel (0) target = $region45
    $region44: #{tpu_custom_call.1} parent=1 // pred_region
      _
    $region45: #{tpu_custom_call.1} parent=1 // pred_fallthru
      _
    // Predicated region
    $region46: #{tpu_custom_call.1} parent=1 // pred_check
      _
    $region47: #{tpu_custom_call.1} parent=1 // pred_check_branch
      %52 = sbr.rel (0) target = $region49
    $region48: #{tpu_custom_call.1} parent=1 // pred_region
      _
    $region49: #{tpu_custom_call.1} parent=1 // pred_fallthru
      _
    // Predicated region
    $region50: #{tpu_custom_call.1} parent=1 // pred_check
      _
    $region51: #{tpu_custom_call.1} parent=1 // pred_check_branch
      %54 = sbr.rel (0) target = $region53
    $region52: #{tpu_custom_call.1} parent=1 // pred_region
      %55 = dma.done [#allocation4], 4096
    $region53: #{tpu_custom_call.1} parent=1 // pred_fallthru
      _
    %v56 = vld [vmem:[%s2] sm:$0xff]
    %v57 = vld [vmem:[%s2 + $0x8] sm:$0xff]
    %v58 = vld [vmem:[%s2 + $0x10] sm:$0xff]
    %v59 = vld [vmem:[%s2 + $0x18] sm:$0xff]
    %v60 = vld [vmem:[%s2 + $0x20] sm:$0xff]
    %v61 = vld [vmem:[%s2 + $0x28] sm:$0xff]
    %v62 = vld [vmem:[%s2 + $0x30] sm:$0xff]
    %v63 = vld [vmem:[%s2 + $0x38] sm:$0xff]
    %v64 = vld [vmem:[%s2 + $0x40] sm:$0xff]
    %v65 = vld [vmem:[%s2 + $0x48] sm:$0xff]
    %v66 = vld [vmem:[%s2 + $0x50] sm:$0xff]
    %v67 = vld [vmem:[%s2 + $0x58] sm:$0xff]
    %v68 = vld [vmem:[%s2 + $0x60] sm:$0xff]
    %v69 = vld [vmem:[%s2 + $0x68] sm:$0xff]
    %v70 = vld [vmem:[%s2 + $0x70] sm:$0xff]
    %v71 = vld [vmem:[%s2 + $0x78] sm:$0xff]
    %v72 = vld [vmem:[#allocation3] sm:$0xff]
    %v73 = vld [vmem:[#allocation3 + $0x8] sm:$0xff]
    %v74 = vld [vmem:[#allocation3 + $0x10] sm:$0xff]
    %v75 = vld [vmem:[#allocation3 + $0x18] sm:$0xff]
    %v76 = vld [vmem:[#allocation3 + $0x20] sm:$0xff]
    %v77 = vld [vmem:[#allocation3 + $0x28] sm:$0xff]
    %v78 = vld [vmem:[#allocation3 + $0x30] sm:$0xff]
    %v79 = vld [vmem:[#allocation3 + $0x38] sm:$0xff]
    %v80 = vld [vmem:[#allocation3 + $0x40] sm:$0xff]
    %v81 = vld [vmem:[#allocation3 + $0x48] sm:$0xff]
    %v82 = vld [vmem:[#allocation3 + $0x50] sm:$0xff]
    %v83 = vld [vmem:[#allocation3 + $0x58] sm:$0xff]
    %v84 = vld [vmem:[#allocation3 + $0x60] sm:$0xff]
    %v85 = vld [vmem:[#allocation3 + $0x68] sm:$0xff]
    %v86 = vld [vmem:[#allocation3 + $0x70] sm:$0xff]
    %v87 = vld [vmem:[#allocation3 + $0x78] sm:$0xff]
    %v88 = vld [vmem:[#allocation3 + $0x80] sm:$0xff]
    %v89 = vld [vmem:[#allocation3 + $0x88] sm:$0xff]
    %v90 = vld [vmem:[#allocation3 + $0x90] sm:$0xff]
    %v91 = vld [vmem:[#allocation3 + $0x98] sm:$0xff]
    %v92 = vld [vmem:[#allocation3 + $0xa0] sm:$0xff]
    %v93 = vld [vmem:[#allocation3 + $0xa8] sm:$0xff]
    %v94 = vld [vmem:[#allocation3 + $0xb0] sm:$0xff]
    %v95 = vld [vmem:[#allocation3 + $0xb8] sm:$0xff]
    %v96 = vld [vmem:[#allocation3 + $0xc0] sm:$0xff]
    %v97 = vld [vmem:[#allocation3 + $0xc8] sm:$0xff]
    %v98 = vld [vmem:[#allocation3 + $0xd0] sm:$0xff]
    %v99 = vld [vmem:[#allocation3 + $0xd8] sm:$0xff]
    %v100 = vld [vmem:[#allocation3 + $0xe0] sm:$0xff]
    %v101 = vld [vmem:[#allocation3 + $0xe8] sm:$0xff]
    %v102 = vld [vmem:[#allocation3 + $0xf0] sm:$0xff]
    %v103 = vld [vmem:[#allocation3 + $0xf8] sm:$0xff]
    %v104 = vld [vmem:[%s5] sm:$0x3]
    %v106 = vlaneseq
    %v107 = vshrl.u32 %v106, 7
    %v108 = vsub.s32 0, %v107
    %v109 = vrot.slane %v104, %v108
    %v110 = vlaneseq
    %v111 = vshrl.u32 %v110, 7
    %v112 = vsub.s32 1, %v111
    %v113 = vrot.slane %v104, %v112
    %v116 = vld [vmem:[%s0] sm:$0xff]
    %v117 = vld [vmem:[%s0 + $0x8] sm:$0xff]
    %v118 = vld [vmem:[%s1] sm:$0x1f]
    %v119 = vld [vmem:[%s1 + $0x8] sm:$0x1f]
    %v120 = vld [vmem:[%s3] sm:$0x3]
    %v122 = vlaneseq
    %v123 = vshrl.u32 %v122, 7
    %v124 = vsub.s32 0, %v123
    %v125 = vrot.slane %v120, %v124
    %v126 = vlaneseq
    %v127 = vshrl.u32 %v126, 7
    %v128 = vsub.s32 1, %v127
    %v129 = vrot.slane %v120, %v128
    %vm132 = vcmask 39936
    %v134 = vsel %vm132, %v116, 0
    %v137 = vsel %vm132, %v117, 0
    %vm139 = vcmask 1044480
    %v141 = vsel %vm139, %v118, 0
    %v144 = vsel %vm139, %v119, 0
    %146 = vmatprep.subr.mxu0 %v144
    %147 = vmatpush1.msra.mxu0 %v141
    %148 = vmatprep.subr.mxu0 0.0
    %149 = vmatpush1.msra.mxu0 0.0
    %150 = vmatprep.subr.mxu0 0.0
    %151 = vmatpush1.msra.mxu0 0.0
    %152 = vmatprep.subr.mxu0 0.0
    %153 = vmatpush1.msra.mxu0 0.0
    %154 = vmatprep.subr.mxu0 0.0
    %155 = vmatpush1.msra.mxu0 0.0
    %156 = vmatprep.subr.mxu0 0.0
    %157 = vmatpush1.msra.mxu0 0.0
    %158 = vmatprep.subr.mxu0 0.0
    %159 = vmatpush1.msra.mxu0 0.0
    %160 = vmatprep.subr.mxu0 0.0
    %161 = vmatpush1.msra.mxu0 0.0
    %162 = vmatprep.subr.mxu0 0.0
    %163 = vmatpush1.msra.mxu0 0.0
    %164 = vmatprep.subr.mxu0 0.0
    %165 = vmatpush1.msra.mxu0 0.0
    %166 = vmatprep.subr.mxu0 0.0
    %167 = vmatpush1.msra.mxu0 0.0
    %168 = vmatprep.subr.mxu0 0.0
    %169 = vmatpush1.msra.mxu0 0.0
    %170 = vmatprep.subr.mxu0 0.0
    %171 = vmatpush1.msra.mxu0 0.0
    %172 = vmatprep.subr.mxu0 0.0
    %173 = vmatpush1.msra.mxu0 0.0
    %174 = vmatprep.subr.mxu0 0.0
    %175 = vmatpush1.msra.mxu0 0.0
    %176 = vmatprep.subr.mxu0 0.0
    %177 = vmatpush1.msra.mxu0 0.0
    %178 = vmatprep.subr.mxu0 0.0
    %179 = vmatpush1.msra.mxu0 0.0
    %180 = vmatprep.subr.mxu0 0.0
    %181 = vmatpush1.msra.mxu0 0.0
    %182 = vmatprep.subr.mxu0 0.0
    %183 = vmatpush1.msra.mxu0 0.0
    %184 = vmatprep.subr.mxu0 0.0
    %185 = vmatpush1.msra.mxu0 0.0
    %186 = vmatprep.subr.mxu0 0.0
    %187 = vmatpush1.msra.mxu0 0.0
    %188 = vmatprep.subr.mxu0 0.0
    %189 = vmatpush1.msra.mxu0 0.0
    %190 = vmatprep.subr.mxu0 0.0
    %191 = vmatpush1.msra.mxu0 0.0
    %192 = vmatprep.subr.mxu0 0.0
    %193 = vmatpush1.msra.mxu0 0.0
    %194 = vmatprep.subr.mxu0 0.0
    %195 = vmatpush1.msra.mxu0 0.0
    %196 = vmatprep.subr.mxu0 0.0
    %197 = vmatpush1.msra.mxu0 0.0
    %198 = vmatprep.subr.mxu0 0.0
    %199 = vmatpush1.msra.mxu0 0.0
    %200 = vmatprep.subr.mxu0 0.0
    %201 = vmatpush1.msra.mxu0 0.0
    %202 = vmatprep.subr.mxu0 0.0
    %203 = vmatpush1.msra.mxu0 0.0
    %204 = vmatprep.subr.mxu0 0.0
    %205 = vmatpush1.msra.mxu0 0.0
    %206 = vmatprep.subr.mxu0 0.0
    %207 = vmatpush1.msra.mxu0 0.0
    %208 = vmatprep.subr.mxu0 0.0
    %209 = vmatpush1.msra.mxu0 0.0
    %210 = vmatprep.mubr.f32.mxu0 0.0
    %211 = vmatmul.mubr.f32.gmra.mrb[0].mxu0 %v134
    %v212 = vpop.f32.mrb[0].mxu0
    %v213 = vadd.f32 %v125, %v212
    %v214 = vpop.f32.mrb[0].mxu0
    %v215 = vadd.f32 %v129, %v214
    %216 = vmatprep.mubr.f32.mxu0 0.0
    %217 = vmatmul.mubr.f32.gmra.mrb[0].mxu0 %v137
    %v218 = vpop.f32.mrb[0].mxu0
    %v219 = vadd.f32 %v125, %v218
    %v220 = vpop.f32.mrb[0].mxu0
    %v221 = vadd.f32 %v129, %v220
    %222 = vdwg.mxu0
    %223 = vst [vmem:[#allocation2] sm:$0xff] %v213
    %224 = vst [vmem:[#allocation2 + $0x8] sm:$0xff] %v215
    %225 = vst [vmem:[#allocation2 + $0x10] sm:$0xff] %v219
    %226 = vst [vmem:[#allocation2 + $0x18] sm:$0xff] %v221
    %v227 = vld [vmem:[#allocation2] sm:$0x3]
    %v228 = vld [vmem:[#allocation2 + $0x8] sm:$0x3]
    %vm229 = vcmask 523264
    %v231 = vsel %vm229, 0.0, 0
    %233 = vmatprep.subr.mxu0 %v57
    %234 = vmatpush1.msra.mxu0 %v56
    %235 = vmatprep.subr.mxu0 %v59
    %236 = vmatpush1.msra.mxu0 %v58
    %237 = vmatprep.subr.mxu0 %v61
    %238 = vmatpush1.msra.mxu0 %v60
    %239 = vmatprep.subr.mxu0 %v63
    %240 = vmatpush1.msra.mxu0 %v62
    %241 = vmatprep.subr.mxu0 %v65
    %242 = vmatpush1.msra.mxu0 %v64
    %243 = vmatprep.subr.mxu0 %v67
    %244 = vmatpush1.msra.mxu0 %v66
    %245 = vmatprep.subr.mxu0 %v69
    %246 = vmatpush1.msra.mxu0 %v68
    %247 = vmatprep.subr.mxu0 %v71
    %248 = vmatpush1.msra.mxu0 %v70
    %249 = vmatprep.subr.mxu0 0.0
    %250 = vmatpush1.msra.mxu0 0.0
    %251 = vmatprep.subr.mxu0 0.0
    %252 = vmatpush1.msra.mxu0 0.0
    %253 = vmatprep.subr.mxu0 0.0
    %254 = vmatpush1.msra.mxu0 0.0
    %255 = vmatprep.subr.mxu0 0.0
    %256 = vmatpush1.msra.mxu0 0.0
    %257 = vmatprep.subr.mxu0 0.0
    %258 = vmatpush1.msra.mxu0 0.0
    %259 = vmatprep.subr.mxu0 0.0
    %260 = vmatpush1.msra.mxu0 0.0
    %261 = vmatprep.subr.mxu0 0.0
    %262 = vmatpush1.msra.mxu0 0.0
    %263 = vmatprep.subr.mxu0 0.0
    %264 = vmatpush1.msra.mxu0 0.0
    %265 = vmatprep.subr.mxu0 0.0
    %266 = vmatpush1.msra.mxu0 0.0
    %267 = vmatprep.subr.mxu0 0.0
    %268 = vmatpush1.msra.mxu0 0.0
    %269 = vmatprep.subr.mxu0 0.0
    %270 = vmatpush1.msra.mxu0 0.0
    %271 = vmatprep.subr.mxu0 0.0
    %272 = vmatpush1.msra.mxu0 0.0
    %273 = vmatprep.subr.mxu0 0.0
    %274 = vmatpush1.msra.mxu0 0.0
    %275 = vmatprep.subr.mxu0 0.0
    %276 = vmatpush1.msra.mxu0 0.0
    %277 = vmatprep.subr.mxu0 0.0
    %278 = vmatpush1.msra.mxu0 0.0
    %279 = vmatprep.subr.mxu0 0.0
    %280 = vmatpush1.msra.mxu0 0.0
    %281 = vmatprep.subr.mxu0 0.0
    %282 = vmatpush1.msra.mxu0 0.0
    %283 = vmatprep.subr.mxu0 0.0
    %284 = vmatpush1.msra.mxu0 0.0
    %285 = vmatprep.subr.mxu0 0.0
    %286 = vmatpush1.msra.mxu0 0.0
    %287 = vmatprep.subr.mxu0 0.0
    %288 = vmatpush1.msra.mxu0 0.0
    %289 = vmatprep.subr.mxu0 0.0
    %290 = vmatpush1.msra.mxu0 0.0
    %291 = vmatprep.subr.mxu0 0.0
    %292 = vmatpush1.msra.mxu0 0.0
    %293 = vmatprep.subr.mxu0 0.0
    %294 = vmatpush1.msra.mxu0 0.0
    %295 = vmatprep.subr.mxu0 0.0
    %296 = vmatpush1.msra.mxu0 0.0
    %297 = vmatprep.mubr.f32.mxu0 0.0
    %298 = vmatmul.mubr.f32.gmra.mrb[0].mxu0 %v231
    %v299 = vpop.f32.mrb[0].mxu0
    %v300 = vadd.f32 0.0, %v299
    %v301 = vpop.f32.mrb[0].mxu0
    %v302 = vadd.f32 0.0, %v301
    %303 = vdwg.mxu0
    %v304 = vadd.f32 %v227, %v300
    %v305 = vadd.f32 %v228, %v302
    %v306 = vxor.u32 %v304, 2147483648
    %v307 = vxor.u32 %v305, 2147483648
    %v308 = vmul.f32 %v306, 1.442695
    %v309 = vpow.pop %v308
    %v310 = vmul.f32 %v307, 1.442695
    %v311 = vpow.pop %v310
    %v312 = vadd.f32 %v309, 1.0
    %v313 = vadd.f32 %v311, 1.0
    %v314 = vrcp.pop %v312
    %v315 = vmul.f32 1.0, %v314
    %v316 = vrcp.pop %v313
    %v317 = vmul.f32 1.0, %v316
    %v318 = vtanh.pop %v305
    %v319 = vmul.f32 %v315, 0.0
    %321 = vrot.lane.b32.xlu0 %v318, 64
    %v322 = vpop.permute.xlu0 %321
    %v324 = vmul.f32 %v315, %v322
    %326 = vrot.lane.b32.xlu0 %v324, 64
    %v327 = vpop.permute.xlu0 %326
    %v329 = vadd.f32 %v319, %v327
    %v330 = vtanh.pop %v329
    %332 = vrot.lane.b32.xlu0 %v330, 64
    %v333 = vpop.permute.xlu0 %332
    %v335 = vmul.f32 %v317, %v333
    %v336 = vsel %vm229, %v335, 0.0
    %337 = vmatprep.subr.mxu0 %v73
    %338 = vmatpush1.msra.mxu0 %v72
    %339 = vmatprep.subr.mxu0 %v75
    %340 = vmatpush1.msra.mxu0 %v74
    %341 = vmatprep.subr.mxu0 %v77
    %342 = vmatpush1.msra.mxu0 %v76
    %343 = vmatprep.subr.mxu0 %v79
    %344 = vmatpush1.msra.mxu0 %v78
    %345 = vmatprep.subr.mxu0 %v81
    %346 = vmatpush1.msra.mxu0 %v80
    %347 = vmatprep.subr.mxu0 %v83
    %348 = vmatpush1.msra.mxu0 %v82
    %349 = vmatprep.subr.mxu0 %v85
    %350 = vmatpush1.msra.mxu0 %v84
    %351 = vmatprep.subr.mxu0 %v87
    %352 = vmatpush1.msra.mxu0 %v86
    %353 = vmatprep.subr.mxu0 %v89
    %354 = vmatpush1.msra.mxu0 %v88
    %355 = vmatprep.subr.mxu0 %v91
    %356 = vmatpush1.msra.mxu0 %v90
    %357 = vmatprep.subr.mxu0 %v93
    %358 = vmatpush1.msra.mxu0 %v92
    %359 = vmatprep.subr.mxu0 %v95
    %360 = vmatpush1.msra.mxu0 %v94
    %361 = vmatprep.subr.mxu0 %v97
    %362 = vmatpush1.msra.mxu0 %v96
    %363 = vmatprep.subr.mxu0 %v99
    %364 = vmatpush1.msra.mxu0 %v98
    %365 = vmatprep.subr.mxu0 %v101
    %366 = vmatpush1.msra.mxu0 %v100
    %367 = vmatprep.subr.mxu0 %v103
    %368 = vmatpush1.msra.mxu0 %v102
    %369 = vmatprep.subr.mxu0 0.0
    %370 = vmatpush1.msra.mxu0 0.0
    %371 = vmatprep.subr.mxu0 0.0
    %372 = vmatpush1.msra.mxu0 0.0
    %373 = vmatprep.subr.mxu0 0.0
    %374 = vmatpush1.msra.mxu0 0.0
    %375 = vmatprep.subr.mxu0 0.0
    %376 = vmatpush1.msra.mxu0 0.0
    %377 = vmatprep.subr.mxu0 0.0
    %378 = vmatpush1.msra.mxu0 0.0
    %379 = vmatprep.subr.mxu0 0.0
    %380 = vmatpush1.msra.mxu0 0.0
    %381 = vmatprep.subr.mxu0 0.0
    %382 = vmatpush1.msra.mxu0 0.0
    %383 = vmatprep.subr.mxu0 0.0
    %384 = vmatpush1.msra.mxu0 0.0
    %385 = vmatprep.subr.mxu0 0.0
    %386 = vmatpush1.msra.mxu0 0.0
    %387 = vmatprep.subr.mxu0 0.0
    %388 = vmatpush1.msra.mxu0 0.0
    %389 = vmatprep.subr.mxu0 0.0
    %390 = vmatpush1.msra.mxu0 0.0
    %391 = vmatprep.subr.mxu0 0.0
    %392 = vmatpush1.msra.mxu0 0.0
    %393 = vmatprep.subr.mxu0 0.0
    %394 = vmatpush1.msra.mxu0 0.0
    %395 = vmatprep.subr.mxu0 0.0
    %396 = vmatpush1.msra.mxu0 0.0
    %397 = vmatprep.subr.mxu0 0.0
    %398 = vmatpush1.msra.mxu0 0.0
    %399 = vmatprep.subr.mxu0 0.0
    %400 = vmatpush1.msra.mxu0 0.0
    %401 = vmatprep.mubr.f32.mxu0 0.0
    %402 = vmatmul.mubr.f32.gmra.mrb[0].mxu0 %v336
    %v403 = vpop.f32.mrb[0].mxu0
    %v404 = vadd.f32 %v109, %v403
    %v405 = vpop.f32.mrb[0].mxu0
    %v406 = vadd.f32 %v113, %v405
    %407 = vdwg.mxu0
    %v408 = vxor.u32 %v404, 2147483648
    %v409 = vxor.u32 %v406, 2147483648
    %v410 = vmul.f32 %v408, 1.442695
    %v411 = vpow.pop %v410
    %v412 = vmul.f32 %v409, 1.442695
    %v413 = vpow.pop %v412
    %v414 = vadd.f32 %v411, 1.0
    %v415 = vadd.f32 %v413, 1.0
    %v416 = vrcp.pop %v414
    %v417 = vmul.f32 1.0, %v416
    %v418 = vrcp.pop %v415
    %v419 = vmul.f32 1.0, %v418
    %v420 = vtanh.pop %v406
    %v421 = vmul.f32 %v417, 0.0
    %423 = vrot.lane.b32.xlu0 %v420, 64
    %v424 = vpop.permute.xlu0 %423
    %v426 = vmul.f32 %v417, %v424
    %428 = vrot.lane.b32.xlu0 %v426, 64
    %v429 = vpop.permute.xlu0 %428
    %v431 = vadd.f32 %v421, %v429
    %v432 = vtanh.pop %v431
    %434 = vrot.lane.b32.xlu0 %v432, 64
    %v435 = vpop.permute.xlu0 %434
    %v437 = vmul.f32 %v419, %v435
    %v438 = vld [vmem:[#allocation2] sm:$0xc]
    %v439 = vld [vmem:[#allocation2 + $0x8] sm:$0xc]
    %v441 = vsel %vm229, %v335, 0
    %443 = vmatprep.subr.mxu0 %v57
    %444 = vmatpush1.msra.mxu0 %v56
    %445 = vmatprep.subr.mxu0 %v59
    %446 = vmatpush1.msra.mxu0 %v58
    %447 = vmatprep.subr.mxu0 %v61
    %448 = vmatpush1.msra.mxu0 %v60
    %449 = vmatprep.subr.mxu0 %v63
    %450 = vmatpush1.msra.mxu0 %v62
    %451 = vmatprep.subr.mxu0 %v65
    %452 = vmatpush1.msra.mxu0 %v64
    %453 = vmatprep.subr.mxu0 %v67
    %454 = vmatpush1.msra.mxu0 %v66
    %455 = vmatprep.subr.mxu0 %v69
    %456 = vmatpush1.msra.mxu0 %v68
    %457 = vmatprep.subr.mxu0 %v71
    %458 = vmatpush1.msra.mxu0 %v70
    %459 = vmatprep.subr.mxu0 0.0
    %460 = vmatpush1.msra.mxu0 0.0
    %461 = vmatprep.subr.mxu0 0.0
    %462 = vmatpush1.msra.mxu0 0.0
    %463 = vmatprep.subr.mxu0 0.0
    %464 = vmatpush1.msra.mxu0 0.0
    %465 = vmatprep.subr.mxu0 0.0
    %466 = vmatpush1.msra.mxu0 0.0
    %467 = vmatprep.subr.mxu0 0.0
    %468 = vmatpush1.msra.mxu0 0.0
    %469 = vmatprep.subr.mxu0 0.0
    %470 = vmatpush1.msra.mxu0 0.0
    %471 = vmatprep.subr.mxu0 0.0
    %472 = vmatpush1.msra.mxu0 0.0
    %473 = vmatprep.subr.mxu0 0.0
    %474 = vmatpush1.msra.mxu0 0.0
    %475 = vmatprep.subr.mxu0 0.0
    %476 = vmatpush1.msra.mxu0 0.0
    %477 = vmatprep.subr.mxu0 0.0
    %478 = vmatpush1.msra.mxu0 0.0
    %479 = vmatprep.subr.mxu0 0.0
    %480 = vmatpush1.msra.mxu0 0.0
    %481 = vmatprep.subr.mxu0 0.0
    %482 = vmatpush1.msra.mxu0 0.0
    %483 = vmatprep.subr.mxu0 0.0
    %484 = vmatpush1.msra.mxu0 0.0
    %485 = vmatprep.subr.mxu0 0.0
    %486 = vmatpush1.msra.mxu0 0.0
    %487 = vmatprep.subr.mxu0 0.0
    %488 = vmatpush1.msra.mxu0 0.0
    %489 = vmatprep.subr.mxu0 0.0
    %490 = vmatpush1.msra.mxu0 0.0
    %491 = vmatprep.subr.mxu0 0.0
    %492 = vmatpush1.msra.mxu0 0.0
    %493 = vmatprep.subr.mxu0 0.0
    %494 = vmatpush1.msra.mxu0 0.0
    %495 = vmatprep.subr.mxu0 0.0
    %496 = vmatpush1.msra.mxu0 0.0
    %497 = vmatprep.subr.mxu0 0.0
    %498 = vmatpush1.msra.mxu0 0.0
    %499 = vmatprep.subr.mxu0 0.0
    %500 = vmatpush1.msra.mxu0 0.0
    %501 = vmatprep.subr.mxu0 0.0
    %502 = vmatpush1.msra.mxu0 0.0
    %503 = vmatprep.subr.mxu0 0.0
    %504 = vmatpush1.msra.mxu0 0.0
    %505 = vmatprep.subr.mxu0 0.0
    %506 = vmatpush1.msra.mxu0 0.0
    %507 = vmatprep.mubr.f32.mxu0 0.0
    %508 = vmatmul.mubr.f32.gmra.mrb[0].mxu0 %v441
    %v509 = vpop.f32.mrb[0].mxu0
    %v510 = vadd.f32 0.0, %v509
    %v511 = vpop.f32.mrb[0].mxu0
    %v512 = vadd.f32 0.0, %v511
    %513 = vdwg.mxu0
    %v516 = vrot.slane %v510, 6
    %v517 = vrot.slane %v512, 6
    %v520 = vadd.f32 %v438, %v516
    %v521 = vadd.f32 %v439, %v517
    %v522 = vxor.u32 %v520, 2147483648
    %v523 = vxor.u32 %v521, 2147483648
    %v524 = vmul.f32 %v522, 1.442695
    %v525 = vpow.pop %v524
    %v526 = vmul.f32 %v523, 1.442695
    %v527 = vpow.pop %v526
    %v528 = vadd.f32 %v525, 1.0
    %v529 = vadd.f32 %v527, 1.0
    %v530 = vrcp.pop %v528
    %v531 = vmul.f32 1.0, %v530
    %v532 = vrcp.pop %v529
    %v533 = vmul.f32 1.0, %v532
    %v534 = vtanh.pop %v521
    %v536 = vrot.slane %v329, 6
    %v538 = vmul.f32 %v531, %v536
    %540 = vrot.lane.b32.xlu0 %v534, 64
    %v541 = vpop.permute.xlu0 %540
    %v543 = vmul.f32 %v531, %v541
    %545 = vrot.lane.b32.xlu0 %v543, 64
    %v546 = vpop.permute.xlu0 %545
    %v548 = vadd.f32 %v538, %v546
    %v549 = vtanh.pop %v548
    %551 = vrot.lane.b32.xlu0 %v549, 64
    %v552 = vpop.permute.xlu0 %551
    %v554 = vmul.f32 %v533, %v552
    %v556 = vrot.slane %v437, 6
    %557 = vrot.lane.b32.xlu0 %v556, 64
    %v558 = vpop.permute.xlu0 %557
    %v560 = vsel %vm229, %v554, %v558
    %v562 = vrot.slane %v560, 2
    %564 = vmatprep.subr.mxu0 %v73
    %565 = vmatpush1.msra.mxu0 %v72
    %566 = vmatprep.subr.mxu0 %v75
    %567 = vmatpush1.msra.mxu0 %v74
    %568 = vmatprep.subr.mxu0 %v77
    %569 = vmatpush1.msra.mxu0 %v76
    %570 = vmatprep.subr.mxu0 %v79
    %571 = vmatpush1.msra.mxu0 %v78
    %572 = vmatprep.subr.mxu0 %v81
    %573 = vmatpush1.msra.mxu0 %v80
    %574 = vmatprep.subr.mxu0 %v83
    %575 = vmatpush1.msra.mxu0 %v82
    %576 = vmatprep.subr.mxu0 %v85
    %577 = vmatpush1.msra.mxu0 %v84
    %578 = vmatprep.subr.mxu0 %v87
    %579 = vmatpush1.msra.mxu0 %v86
    %580 = vmatprep.subr.mxu0 %v89
    %581 = vmatpush1.msra.mxu0 %v88
    %582 = vmatprep.subr.mxu0 %v91
    %583 = vmatpush1.msra.mxu0 %v90
    %584 = vmatprep.subr.mxu0 %v93
    %585 = vmatpush1.msra.mxu0 %v92
    %586 = vmatprep.subr.mxu0 %v95
    %587 = vmatpush1.msra.mxu0 %v94
    %588 = vmatprep.subr.mxu0 %v97
    %589 = vmatpush1.msra.mxu0 %v96
    %590 = vmatprep.subr.mxu0 %v99
    %591 = vmatpush1.msra.mxu0 %v98
    %592 = vmatprep.subr.mxu0 %v101
    %593 = vmatpush1.msra.mxu0 %v100
    %594 = vmatprep.subr.mxu0 %v103
    %595 = vmatpush1.msra.mxu0 %v102
    %596 = vmatprep.subr.mxu0 0.0
    %597 = vmatpush1.msra.mxu0 0.0
    %598 = vmatprep.subr.mxu0 0.0
    %599 = vmatpush1.msra.mxu0 0.0
    %600 = vmatprep.subr.mxu0 0.0
    %601 = vmatpush1.msra.mxu0 0.0
    %602 = vmatprep.subr.mxu0 0.0
    %603 = vmatpush1.msra.mxu0 0.0
    %604 = vmatprep.subr.mxu0 0.0
    %605 = vmatpush1.msra.mxu0 0.0
    %606 = vmatprep.subr.mxu0 0.0
    %607 = vmatpush1.msra.mxu0 0.0
    %608 = vmatprep.subr.mxu0 0.0
    %609 = vmatpush1.msra.mxu0 0.0
    %610 = vmatprep.subr.mxu0 0.0
    %611 = vmatpush1.msra.mxu0 0.0
    %612 = vmatprep.subr.mxu0 0.0
    %613 = vmatpush1.msra.mxu0 0.0
    %614 = vmatprep.subr.mxu0 0.0
    %615 = vmatpush1.msra.mxu0 0.0
    %616 = vmatprep.subr.mxu0 0.0
    %617 = vmatpush1.msra.mxu0 0.0
    %618 = vmatprep.subr.mxu0 0.0
    %619 = vmatpush1.msra.mxu0 0.0
    %620 = vmatprep.subr.mxu0 0.0
    %621 = vmatpush1.msra.mxu0 0.0
    %622 = vmatprep.subr.mxu0 0.0
    %623 = vmatpush1.msra.mxu0 0.0
    %624 = vmatprep.subr.mxu0 0.0
    %625 = vmatpush1.msra.mxu0 0.0
    %626 = vmatprep.subr.mxu0 0.0
    %627 = vmatpush1.msra.mxu0 0.0
    %628 = vmatprep.mubr.f32.mxu0 0.0
    %629 = vmatmul.mubr.f32.gmra.mrb[0].mxu0 %v562
    %v630 = vpop.f32.mrb[0].mxu0
    %v631 = vadd.f32 %v109, %v630
    %v632 = vpop.f32.mrb[0].mxu0
    %v633 = vadd.f32 %v113, %v632
    %634 = vdwg.mxu0
    %v635 = vxor.u32 %v631, 2147483648
    %v636 = vxor.u32 %v633, 2147483648
    %v637 = vmul.f32 %v635, 1.442695
    %v638 = vpow.pop %v637
    %v639 = vmul.f32 %v636, 1.442695
    %v640 = vpow.pop %v639
    %v641 = vadd.f32 %v638, 1.0
    %v642 = vadd.f32 %v640, 1.0
    %v643 = vrcp.pop %v641
    %v644 = vmul.f32 1.0, %v643
    %v645 = vrcp.pop %v642
    %v646 = vmul.f32 1.0, %v645
    %v647 = vtanh.pop %v633
    %v648 = vmul.f32 %v644, %v431
    %650 = vrot.lane.b32.xlu0 %v647, 64
    %v651 = vpop.permute.xlu0 %650
    %v653 = vmul.f32 %v644, %v651
    %655 = vrot.lane.b32.xlu0 %v653, 64
    %v656 = vpop.permute.xlu0 %655
    %v658 = vadd.f32 %v648, %v656
    %v659 = vtanh.pop %v658
    %661 = vrot.lane.b32.xlu0 %v659, 64
    %v662 = vpop.permute.xlu0 %661
    %v664 = vmul.f32 %v646, %v662
    %v665 = vld [vmem:[#allocation2] sm:$0x30]
    %v666 = vld [vmem:[#allocation2 + $0x8] sm:$0x30]
    %v668 = vrot.slane %v554, 2
    %v669 = vsel %vm229, %v668, 0
    %671 = vmatprep.subr.mxu0 %v57
    %672 = vmatpush1.msra.mxu0 %v56
    %673 = vmatprep.subr.mxu0 %v59
    %674 = vmatpush1.msra.mxu0 %v58
    %675 = vmatprep.subr.mxu0 %v61
    %676 = vmatpush1.msra.mxu0 %v60
    %677 = vmatprep.subr.mxu0 %v63
    %678 = vmatpush1.msra.mxu0 %v62
    %679 = vmatprep.subr.mxu0 %v65
    %680 = vmatpush1.msra.mxu0 %v64
    %681 = vmatprep.subr.mxu0 %v67
    %682 = vmatpush1.msra.mxu0 %v66
    %683 = vmatprep.subr.mxu0 %v69
    %684 = vmatpush1.msra.mxu0 %v68
    %685 = vmatprep.subr.mxu0 %v71
    %686 = vmatpush1.msra.mxu0 %v70
    %687 = vmatprep.subr.mxu0 0.0
    %688 = vmatpush1.msra.mxu0 0.0
    %689 = vmatprep.subr.mxu0 0.0
    %690 = vmatpush1.msra.mxu0 0.0
    %691 = vmatprep.subr.mxu0 0.0
    %692 = vmatpush1.msra.mxu0 0.0
    %693 = vmatprep.subr.mxu0 0.0
    %694 = vmatpush1.msra.mxu0 0.0
    %695 = vmatprep.subr.mxu0 0.0
    %696 = vmatpush1.msra.mxu0 0.0
    %697 = vmatprep.subr.mxu0 0.0
    %698 = vmatpush1.msra.mxu0 0.0
    %699 = vmatprep.subr.mxu0 0.0
    %700 = vmatpush1.msra.mxu0 0.0
    %701 = vmatprep.subr.mxu0 0.0
    %702 = vmatpush1.msra.mxu0 0.0
    %703 = vmatprep.subr.mxu0 0.0
    %704 = vmatpush1.msra.mxu0 0.0
    %705 = vmatprep.subr.mxu0 0.0
    %706 = vmatpush1.msra.mxu0 0.0
    %707 = vmatprep.subr.mxu0 0.0
    %708 = vmatpush1.msra.mxu0 0.0
    %709 = vmatprep.subr.mxu0 0.0
    %710 = vmatpush1.msra.mxu0 0.0
    %711 = vmatprep.subr.mxu0 0.0
    %712 = vmatpush1.msra.mxu0 0.0
    %713 = vmatprep.subr.mxu0 0.0
    %714 = vmatpush1.msra.mxu0 0.0
    %715 = vmatprep.subr.mxu0 0.0
    %716 = vmatpush1.msra.mxu0 0.0
    %717 = vmatprep.subr.mxu0 0.0
    %718 = vmatpush1.msra.mxu0 0.0
    %719 = vmatprep.subr.mxu0 0.0
    %720 = vmatpush1.msra.mxu0 0.0
    %721 = vmatprep.subr.mxu0 0.0
    %722 = vmatpush1.msra.mxu0 0.0
    %723 = vmatprep.subr.mxu0 0.0
    %724 = vmatpush1.msra.mxu0 0.0
    %725 = vmatprep.subr.mxu0 0.0
    %726 = vmatpush1.msra.mxu0 0.0
    %727 = vmatprep.subr.mxu0 0.0
    %728 = vmatpush1.msra.mxu0 0.0
    %729 = vmatprep.subr.mxu0 0.0
    %730 = vmatpush1.msra.mxu0 0.0
    %731 = vmatprep.subr.mxu0 0.0
    %732 = vmatpush1.msra.mxu0 0.0
    %733 = vmatprep.subr.mxu0 0.0
    %734 = vmatpush1.msra.mxu0 0.0
    %735 = vmatprep.mubr.f32.mxu0 0.0
    %736 = vmatmul.mubr.f32.gmra.mrb[0].mxu0 %v669
    %v737 = vpop.f32.mrb[0].mxu0
    %v738 = vadd.f32 0.0, %v737
    %v739 = vpop.f32.mrb[0].mxu0
    %v740 = vadd.f32 0.0, %v739
    %741 = vdwg.mxu0
    %v744 = vrot.slane %v738, 4
    %v745 = vrot.slane %v740, 4
    %v748 = vadd.f32 %v665, %v744
    %v749 = vadd.f32 %v666, %v745
    %v750 = vxor.u32 %v748, 2147483648
    %v751 = vxor.u32 %v749, 2147483648
    %v752 = vmul.f32 %v750, 1.442695
    %v753 = vpow.pop %v752
    %v754 = vmul.f32 %v751, 1.442695
    %v755 = vpow.pop %v754
    %v756 = vadd.f32 %v753, 1.0
    %v757 = vadd.f32 %v755, 1.0
    %v758 = vrcp.pop %v756
    %v759 = vmul.f32 1.0, %v758
    %v760 = vrcp.pop %v757
    %v761 = vmul.f32 1.0, %v760
    %v762 = vtanh.pop %v749
    %v764 = vrot.slane %v548, 6
    %v766 = vmul.f32 %v759, %v764
    %768 = vrot.lane.b32.xlu0 %v762, 64
    %v769 = vpop.permute.xlu0 %768
    %v771 = vmul.f32 %v759, %v769
    %773 = vrot.lane.b32.xlu0 %v771, 64
    %v774 = vpop.permute.xlu0 %773
    %v776 = vadd.f32 %v766, %v774
    %v777 = vtanh.pop %v776
    %779 = vrot.lane.b32.xlu0 %v777, 64
    %v780 = vpop.permute.xlu0 %779
    %v782 = vmul.f32 %v761, %v780
    %v784 = vrot.slane %v664, 4
    %785 = vrot.lane.b32.xlu0 %v784, 64
    %v786 = vpop.permute.xlu0 %785
    %v788 = vsel %vm229, %v782, %v786
    %v790 = vrot.slane %v788, 4
    %792 = vmatprep.subr.mxu0 %v73
    %793 = vmatpush1.msra.mxu0 %v72
    %794 = vmatprep.subr.mxu0 %v75
    %795 = vmatpush1.msra.mxu0 %v74
    %796 = vmatprep.subr.mxu0 %v77
    %797 = vmatpush1.msra.mxu0 %v76
    %798 = vmatprep.subr.mxu0 %v79
    %799 = vmatpush1.msra.mxu0 %v78
    %800 = vmatprep.subr.mxu0 %v81
    %801 = vmatpush1.msra.mxu0 %v80
    %802 = vmatprep.subr.mxu0 %v83
    %803 = vmatpush1.msra.mxu0 %v82
    %804 = vmatprep.subr.mxu0 %v85
    %805 = vmatpush1.msra.mxu0 %v84
    %806 = vmatprep.subr.mxu0 %v87
    %807 = vmatpush1.msra.mxu0 %v86
    %808 = vmatprep.subr.mxu0 %v89
    %809 = vmatpush1.msra.mxu0 %v88
    %810 = vmatprep.subr.mxu0 %v91
    %811 = vmatpush1.msra.mxu0 %v90
    %812 = vmatprep.subr.mxu0 %v93
    %813 = vmatpush1.msra.mxu0 %v92
    %814 = vmatprep.subr.mxu0 %v95
    %815 = vmatpush1.msra.mxu0 %v94
    %816 = vmatprep.subr.mxu0 %v97
    %817 = vmatpush1.msra.mxu0 %v96
    %818 = vmatprep.subr.mxu0 %v99
    %819 = vmatpush1.msra.mxu0 %v98
    %820 = vmatprep.subr.mxu0 %v101
    %821 = vmatpush1.msra.mxu0 %v100
    %822 = vmatprep.subr.mxu0 %v103
    %823 = vmatpush1.msra.mxu0 %v102
    %824 = vmatprep.subr.mxu0 0.0
    %825 = vmatpush1.msra.mxu0 0.0
    %826 = vmatprep.subr.mxu0 0.0
    %827 = vmatpush1.msra.mxu0 0.0
    %828 = vmatprep.subr.mxu0 0.0
    %829 = vmatpush1.msra.mxu0 0.0
    %830 = vmatprep.subr.mxu0 0.0
    %831 = vmatpush1.msra.mxu0 0.0
    %832 = vmatprep.subr.mxu0 0.0
    %833 = vmatpush1.msra.mxu0 0.0
    %834 = vmatprep.subr.mxu0 0.0
    %835 = vmatpush1.msra.mxu0 0.0
    %836 = vmatprep.subr.mxu0 0.0
    %837 = vmatpush1.msra.mxu0 0.0
    %838 = vmatprep.subr.mxu0 0.0
    %839 = vmatpush1.msra.mxu0 0.0
    %840 = vmatprep.subr.mxu0 0.0
    %841 = vmatpush1.msra.mxu0 0.0
    %842 = vmatprep.subr.mxu0 0.0
    %843 = vmatpush1.msra.mxu0 0.0
    %844 = vmatprep.subr.mxu0 0.0
    %845 = vmatpush1.msra.mxu0 0.0
    %846 = vmatprep.subr.mxu0 0.0
    %847 = vmatpush1.msra.mxu0 0.0
    %848 = vmatprep.subr.mxu0 0.0
    %849 = vmatpush1.msra.mxu0 0.0
    %850 = vmatprep.subr.mxu0 0.0
    %851 = vmatpush1.msra.mxu0 0.0
    %852 = vmatprep.subr.mxu0 0.0
    %853 = vmatpush1.msra.mxu0 0.0
    %854 = vmatprep.subr.mxu0 0.0
    %855 = vmatpush1.msra.mxu0 0.0
    %856 = vmatprep.mubr.f32.mxu0 0.0
    %857 = vmatmul.mubr.f32.gmra.mrb[0].mxu0 %v790
    %v858 = vpop.f32.mrb[0].mxu0
    %v859 = vadd.f32 %v109, %v858
    %v860 = vpop.f32.mrb[0].mxu0
    %v861 = vadd.f32 %v113, %v860
    %862 = vdwg.mxu0
    %v863 = vxor.u32 %v859, 2147483648
    %v864 = vxor.u32 %v861, 2147483648
    %v865 = vmul.f32 %v863, 1.442695
    %v866 = vpow.pop %v865
    %v867 = vmul.f32 %v864, 1.442695
    %v868 = vpow.pop %v867
    %v869 = vadd.f32 %v866, 1.0
    %v870 = vadd.f32 %v868, 1.0
    %v871 = vrcp.pop %v869
    %v872 = vmul.f32 1.0, %v871
    %v873 = vrcp.pop %v870
    %v874 = vmul.f32 1.0, %v873
    %v875 = vtanh.pop %v861
    %v876 = vmul.f32 %v872, %v658
    %878 = vrot.lane.b32.xlu0 %v875, 64
    %v879 = vpop.permute.xlu0 %878
    %v881 = vmul.f32 %v872, %v879
    %883 = vrot.lane.b32.xlu0 %v881, 64
    %v884 = vpop.permute.xlu0 %883
    %v886 = vadd.f32 %v876, %v884
    %v887 = vtanh.pop %v886
    %889 = vrot.lane.b32.xlu0 %v887, 64
    %v890 = vpop.permute.xlu0 %889
    %v892 = vmul.f32 %v874, %v890
    %v893 = vld [vmem:[#allocation2] sm:$0xc0]
    %v894 = vld [vmem:[#allocation2 + $0x8] sm:$0xc0]
    %v896 = vrot.slane %v782, 4
    %v897 = vsel %vm229, %v896, 0
    %899 = vmatprep.subr.mxu0 %v57
    %900 = vmatpush1.msra.mxu0 %v56
    %901 = vmatprep.subr.mxu0 %v59
    %902 = vmatpush1.msra.mxu0 %v58
    %903 = vmatprep.subr.mxu0 %v61
    %904 = vmatpush1.msra.mxu0 %v60
    %905 = vmatprep.subr.mxu0 %v63
    %906 = vmatpush1.msra.mxu0 %v62
    %907 = vmatprep.subr.mxu0 %v65
    %908 = vmatpush1.msra.mxu0 %v64
    %909 = vmatprep.subr.mxu0 %v67
    %910 = vmatpush1.msra.mxu0 %v66
    %911 = vmatprep.subr.mxu0 %v69
    %912 = vmatpush1.msra.mxu0 %v68
    %913 = vmatprep.subr.mxu0 %v71
    %914 = vmatpush1.msra.mxu0 %v70
    %915 = vmatprep.subr.mxu0 0.0
    %916 = vmatpush1.msra.mxu0 0.0
    %917 = vmatprep.subr.mxu0 0.0
    %918 = vmatpush1.msra.mxu0 0.0
    %919 = vmatprep.subr.mxu0 0.0
    %920 = vmatpush1.msra.mxu0 0.0
    %921 = vmatprep.subr.mxu0 0.0
    %922 = vmatpush1.msra.mxu0 0.0
    %923 = vmatprep.subr.mxu0 0.0
    %924 = vmatpush1.msra.mxu0 0.0
    %925 = vmatprep.subr.mxu0 0.0
    %926 = vmatpush1.msra.mxu0 0.0
    %927 = vmatprep.subr.mxu0 0.0
    %928 = vmatpush1.msra.mxu0 0.0
    %929 = vmatprep.subr.mxu0 0.0
    %930 = vmatpush1.msra.mxu0 0.0
    %931 = vmatprep.subr.mxu0 0.0
    %932 = vmatpush1.msra.mxu0 0.0
    %933 = vmatprep.subr.mxu0 0.0
    %934 = vmatpush1.msra.mxu0 0.0
    %935 = vmatprep.subr.mxu0 0.0
    %936 = vmatpush1.msra.mxu0 0.0
    %937 = vmatprep.subr.mxu0 0.0
    %938 = vmatpush1.msra.mxu0 0.0
    %939 = vmatprep.subr.mxu0 0.0
    %940 = vmatpush1.msra.mxu0 0.0
    %941 = vmatprep.subr.mxu0 0.0
    %942 = vmatpush1.msra.mxu0 0.0
    %943 = vmatprep.subr.mxu0 0.0
    %944 = vmatpush1.msra.mxu0 0.0
    %945 = vmatprep.subr.mxu0 0.0
    %946 = vmatpush1.msra.mxu0 0.0
    %947 = vmatprep.subr.mxu0 0.0
    %948 = vmatpush1.msra.mxu0 0.0
    %949 = vmatprep.subr.mxu0 0.0
    %950 = vmatpush1.msra.mxu0 0.0
    %951 = vmatprep.subr.mxu0 0.0
    %952 = vmatpush1.msra.mxu0 0.0
    %953 = vmatprep.subr.mxu0 0.0
    %954 = vmatpush1.msra.mxu0 0.0
    %955 = vmatprep.subr.mxu0 0.0
    %956 = vmatpush1.msra.mxu0 0.0
    %957 = vmatprep.subr.mxu0 0.0
    %958 = vmatpush1.msra.mxu0 0.0
    %959 = vmatprep.subr.mxu0 0.0
    %960 = vmatpush1.msra.mxu0 0.0
    %961 = vmatprep.subr.mxu0 0.0
    %962 = vmatpush1.msra.mxu0 0.0
    %963 = vmatprep.mubr.f32.mxu0 0.0
    %964 = vmatmul.mubr.f32.gmra.mrb[0].mxu0 %v897
    %v965 = vpop.f32.mrb[0].mxu0
    %v966 = vadd.f32 0.0, %v965
    %v967 = vpop.f32.mrb[0].mxu0
    %v968 = vadd.f32 0.0, %v967
    %969 = vdwg.mxu0
    %v972 = vrot.slane %v966, 2
    %v973 = vrot.slane %v968, 2
    %v976 = vadd.f32 %v893, %v972
    %v977 = vadd.f32 %v894, %v973
    %v978 = vxor.u32 %v976, 2147483648
    %v979 = vxor.u32 %v977, 2147483648
    %v980 = vmul.f32 %v978, 1.442695
    %v981 = vpow.pop %v980
    %v982 = vmul.f32 %v979, 1.442695
    %v983 = vpow.pop %v982
    %v984 = vadd.f32 %v981, 1.0
    %v985 = vadd.f32 %v983, 1.0
    %v986 = vrcp.pop %v984
    %v987 = vmul.f32 1.0, %v986
    %v988 = vrcp.pop %v985
    %v989 = vmul.f32 1.0, %v988
    %v990 = vtanh.pop %v977
    %v992 = vrot.slane %v776, 6
    %v994 = vmul.f32 %v987, %v992
    %996 = vrot.lane.b32.xlu0 %v990, 64
    %v997 = vpop.permute.xlu0 %996
    %v999 = vmul.f32 %v987, %v997
    %1001 = vrot.lane.b32.xlu0 %v999, 64
    %v1002 = vpop.permute.xlu0 %1001
    %v1004 = vadd.f32 %v994, %v1002
    %v1005 = vtanh.pop %v1004
    %1007 = vrot.lane.b32.xlu0 %v1005, 64
    %v1008 = vpop.permute.xlu0 %1007
    %v1010 = vmul.f32 %v989, %v1008
    %v1012 = vrot.slane %v892, 2
    %1013 = vrot.lane.b32.xlu0 %v1012, 64
    %v1014 = vpop.permute.xlu0 %1013
    %v1016 = vsel %vm229, %v1010, %v1014
    %v1018 = vrot.slane %v1016, 6
    %1020 = vmatprep.subr.mxu0 %v73
    %1021 = vmatpush1.msra.mxu0 %v72
    %1022 = vmatprep.subr.mxu0 %v75
    %1023 = vmatpush1.msra.mxu0 %v74
    %1024 = vmatprep.subr.mxu0 %v77
    %1025 = vmatpush1.msra.mxu0 %v76
    %1026 = vmatprep.subr.mxu0 %v79
    %1027 = vmatpush1.msra.mxu0 %v78
    %1028 = vmatprep.subr.mxu0 %v81
    %1029 = vmatpush1.msra.mxu0 %v80
    %1030 = vmatprep.subr.mxu0 %v83
    %1031 = vmatpush1.msra.mxu0 %v82
    %1032 = vmatprep.subr.mxu0 %v85
    %1033 = vmatpush1.msra.mxu0 %v84
    %1034 = vmatprep.subr.mxu0 %v87
    %1035 = vmatpush1.msra.mxu0 %v86
    %1036 = vmatprep.subr.mxu0 %v89
    %1037 = vmatpush1.msra.mxu0 %v88
    %1038 = vmatprep.subr.mxu0 %v91
    %1039 = vmatpush1.msra.mxu0 %v90
    %1040 = vmatprep.subr.mxu0 %v93
    %1041 = vmatpush1.msra.mxu0 %v92
    %1042 = vmatprep.subr.mxu0 %v95
    %1043 = vmatpush1.msra.mxu0 %v94
    %1044 = vmatprep.subr.mxu0 %v97
    %1045 = vmatpush1.msra.mxu0 %v96
    %1046 = vmatprep.subr.mxu0 %v99
    %1047 = vmatpush1.msra.mxu0 %v98
    %1048 = vmatprep.subr.mxu0 %v101
    %1049 = vmatpush1.msra.mxu0 %v100
    %1050 = vmatprep.subr.mxu0 %v103
    %1051 = vmatpush1.msra.mxu0 %v102
    %1052 = vmatprep.subr.mxu0 0.0
    %1053 = vmatpush1.msra.mxu0 0.0
    %1054 = vmatprep.subr.mxu0 0.0
    %1055 = vmatpush1.msra.mxu0 0.0
    %1056 = vmatprep.subr.mxu0 0.0
    %1057 = vmatpush1.msra.mxu0 0.0
    %1058 = vmatprep.subr.mxu0 0.0
    %1059 = vmatpush1.msra.mxu0 0.0
    %1060 = vmatprep.subr.mxu0 0.0
    %1061 = vmatpush1.msra.mxu0 0.0
    %1062 = vmatprep.subr.mxu0 0.0
    %1063 = vmatpush1.msra.mxu0 0.0
    %1064 = vmatprep.subr.mxu0 0.0
    %1065 = vmatpush1.msra.mxu0 0.0
    %1066 = vmatprep.subr.mxu0 0.0
    %1067 = vmatpush1.msra.mxu0 0.0
    %1068 = vmatprep.subr.mxu0 0.0
    %1069 = vmatpush1.msra.mxu0 0.0
    %1070 = vmatprep.subr.mxu0 0.0
    %1071 = vmatpush1.msra.mxu0 0.0
    %1072 = vmatprep.subr.mxu0 0.0
    %1073 = vmatpush1.msra.mxu0 0.0
    %1074 = vmatprep.subr.mxu0 0.0
    %1075 = vmatpush1.msra.mxu0 0.0
    %1076 = vmatprep.subr.mxu0 0.0
    %1077 = vmatpush1.msra.mxu0 0.0
    %1078 = vmatprep.subr.mxu0 0.0
    %1079 = vmatpush1.msra.mxu0 0.0
    %1080 = vmatprep.subr.mxu0 0.0
    %1081 = vmatpush1.msra.mxu0 0.0
    %1082 = vmatprep.subr.mxu0 0.0
    %1083 = vmatpush1.msra.mxu0 0.0
    %1084 = vmatprep.mubr.f32.mxu0 0.0
    %1085 = vmatmul.mubr.f32.gmra.mrb[0].mxu0 %v1018
    %v1086 = vpop.f32.mrb[0].mxu0
    %v1087 = vadd.f32 %v109, %v1086
    %v1088 = vpop.f32.mrb[0].mxu0
    %v1089 = vadd.f32 %v113, %v1088
    %1090 = vdwg.mxu0
    %v1091 = vxor.u32 %v1087, 2147483648
    %v1092 = vxor.u32 %v1089, 2147483648
    %v1093 = vmul.f32 %v1091, 1.442695
    %v1094 = vpow.pop %v1093
    %v1095 = vmul.f32 %v1092, 1.442695
    %v1096 = vpow.pop %v1095
    %v1097 = vadd.f32 %v1094, 1.0
    %v1098 = vadd.f32 %v1096, 1.0
    %v1099 = vrcp.pop %v1097
    %v1100 = vmul.f32 1.0, %v1099
    %v1101 = vrcp.pop %v1098
    %v1102 = vmul.f32 1.0, %v1101
    %v1103 = vtanh.pop %v1089
    %v1104 = vmul.f32 %v1100, %v886
    %1106 = vrot.lane.b32.xlu0 %v1103, 64
    %v1107 = vpop.permute.xlu0 %1106
    %v1109 = vmul.f32 %v1100, %v1107
    %1111 = vrot.lane.b32.xlu0 %v1109, 64
    %v1112 = vpop.permute.xlu0 %1111
    %v1114 = vadd.f32 %v1104, %v1112
    %v1115 = vtanh.pop %v1114
    %1117 = vrot.lane.b32.xlu0 %v1115, 64
    %v1118 = vpop.permute.xlu0 %1117
    %v1120 = vmul.f32 %v1102, %v1118
    %v1121 = vld [vmem:[#allocation2 + $0x10] sm:$0x3]
    %v1122 = vld [vmem:[#allocation2 + $0x18] sm:$0x3]
    %v1124 = vrot.slane %v1010, 6
    %v1125 = vsel %vm229, %v1124, 0
    %1127 = vmatprep.subr.mxu0 %v57
    %1128 = vmatpush1.msra.mxu0 %v56
    %1129 = vmatprep.subr.mxu0 %v59
    %1130 = vmatpush1.msra.mxu0 %v58
    %1131 = vmatprep.subr.mxu0 %v61
    %1132 = vmatpush1.msra.mxu0 %v60
    %1133 = vmatprep.subr.mxu0 %v63
    %1134 = vmatpush1.msra.mxu0 %v62
    %1135 = vmatprep.subr.mxu0 %v65
    %1136 = vmatpush1.msra.mxu0 %v64
    %1137 = vmatprep.subr.mxu0 %v67
    %1138 = vmatpush1.msra.mxu0 %v66
    %1139 = vmatprep.subr.mxu0 %v69
    %1140 = vmatpush1.msra.mxu0 %v68
    %1141 = vmatprep.subr.mxu0 %v71
    %1142 = vmatpush1.msra.mxu0 %v70
    %1143 = vmatprep.subr.mxu0 0.0
    %1144 = vmatpush1.msra.mxu0 0.0
    %1145 = vmatprep.subr.mxu0 0.0
    %1146 = vmatpush1.msra.mxu0 0.0
    %1147 = vmatprep.subr.mxu0 0.0
    %1148 = vmatpush1.msra.mxu0 0.0
    %1149 = vmatprep.subr.mxu0 0.0
    %1150 = vmatpush1.msra.mxu0 0.0
    %1151 = vmatprep.subr.mxu0 0.0
    %1152 = vmatpush1.msra.mxu0 0.0
    %1153 = vmatprep.subr.mxu0 0.0
    %1154 = vmatpush1.msra.mxu0 0.0
    %1155 = vmatprep.subr.mxu0 0.0
    %1156 = vmatpush1.msra.mxu0 0.0
    %1157 = vmatprep.subr.mxu0 0.0
    %1158 = vmatpush1.msra.mxu0 0.0
    %1159 = vmatprep.subr.mxu0 0.0
    %1160 = vmatpush1.msra.mxu0 0.0
    %1161 = vmatprep.subr.mxu0 0.0
    %1162 = vmatpush1.msra.mxu0 0.0
    %1163 = vmatprep.subr.mxu0 0.0
    %1164 = vmatpush1.msra.mxu0 0.0
    %1165 = vmatprep.subr.mxu0 0.0
    %1166 = vmatpush1.msra.mxu0 0.0
    %1167 = vmatprep.subr.mxu0 0.0
    %1168 = vmatpush1.msra.mxu0 0.0
    %1169 = vmatprep.subr.mxu0 0.0
    %1170 = vmatpush1.msra.mxu0 0.0
    %1171 = vmatprep.subr.mxu0 0.0
    %1172 = vmatpush1.msra.mxu0 0.0
    %1173 = vmatprep.subr.mxu0 0.0
    %1174 = vmatpush1.msra.mxu0 0.0
    %1175 = vmatprep.subr.mxu0 0.0
    %1176 = vmatpush1.msra.mxu0 0.0
    %1177 = vmatprep.subr.mxu0 0.0
    %1178 = vmatpush1.msra.mxu0 0.0
    %1179 = vmatprep.subr.mxu0 0.0
    %1180 = vmatpush1.msra.mxu0 0.0
    %1181 = vmatprep.subr.mxu0 0.0
    %1182 = vmatpush1.msra.mxu0 0.0
    %1183 = vmatprep.subr.mxu0 0.0
    %1184 = vmatpush1.msra.mxu0 0.0
    %1185 = vmatprep.subr.mxu0 0.0
    %1186 = vmatpush1.msra.mxu0 0.0
    %1187 = vmatprep.subr.mxu0 0.0
    %1188 = vmatpush1.msra.mxu0 0.0
    %1189 = vmatprep.subr.mxu0 0.0
    %1190 = vmatpush1.msra.mxu0 0.0
    %1191 = vmatprep.mubr.f32.mxu0 0.0
    %1192 = vmatmul.mubr.f32.gmra.mrb[0].mxu0 %v1125
    %v1193 = vpop.f32.mrb[0].mxu0
    %v1194 = vadd.f32 0.0, %v1193
    %v1195 = vpop.f32.mrb[0].mxu0
    %v1196 = vadd.f32 0.0, %v1195
    %1197 = vdwg.mxu0
    %v1198 = vadd.f32 %v1121, %v1194
    %v1199 = vadd.f32 %v1122, %v1196
    %v1200 = vxor.u32 %v1198, 2147483648
    %v1201 = vxor.u32 %v1199, 2147483648
    %v1202 = vmul.f32 %v1200, 1.442695
    %v1203 = vpow.pop %v1202
    %v1204 = vmul.f32 %v1201, 1.442695
    %v1205 = vpow.pop %v1204
    %v1206 = vadd.f32 %v1203, 1.0
    %v1207 = vadd.f32 %v1205, 1.0
    %v1208 = vrcp.pop %v1206
    %v1209 = vmul.f32 1.0, %v1208
    %v1210 = vrcp.pop %v1207
    %v1211 = vmul.f32 1.0, %v1210
    %v1212 = vtanh.pop %v1199
    %v1214 = vrot.slane %v1004, 6
    %v1216 = vmul.f32 %v1209, %v1214
    %1218 = vrot.lane.b32.xlu0 %v1212, 64
    %v1219 = vpop.permute.xlu0 %1218
    %v1221 = vmul.f32 %v1209, %v1219
    %1223 = vrot.lane.b32.xlu0 %v1221, 64
    %v1224 = vpop.permute.xlu0 %1223
    %v1226 = vadd.f32 %v1216, %v1224
    %v1227 = vtanh.pop %v1226
    %1229 = vrot.lane.b32.xlu0 %v1227, 64
    %v1230 = vpop.permute.xlu0 %1229
    %v1232 = vmul.f32 %v1211, %v1230
    %1234 = vrot.lane.b32.xlu0 %v1120, 64
    %v1235 = vpop.permute.xlu0 %1234
    %v1237 = vsel %vm229, %v1232, %v1235
    %1238 = vmatprep.subr.mxu0 %v73
    %1239 = vmatpush1.msra.mxu0 %v72
    %1240 = vmatprep.subr.mxu0 %v75
    %1241 = vmatpush1.msra.mxu0 %v74
    %1242 = vmatprep.subr.mxu0 %v77
    %1243 = vmatpush1.msra.mxu0 %v76
    %1244 = vmatprep.subr.mxu0 %v79
    %1245 = vmatpush1.msra.mxu0 %v78
    %1246 = vmatprep.subr.mxu0 %v81
    %1247 = vmatpush1.msra.mxu0 %v80
    %1248 = vmatprep.subr.mxu0 %v83
    %1249 = vmatpush1.msra.mxu0 %v82
    %1250 = vmatprep.subr.mxu0 %v85
    %1251 = vmatpush1.msra.mxu0 %v84
    %1252 = vmatprep.subr.mxu0 %v87
    %1253 = vmatpush1.msra.mxu0 %v86
    %1254 = vmatprep.subr.mxu0 %v89
    %1255 = vmatpush1.msra.mxu0 %v88
    %1256 = vmatprep.subr.mxu0 %v91
    %1257 = vmatpush1.msra.mxu0 %v90
    %1258 = vmatprep.subr.mxu0 %v93
    %1259 = vmatpush1.msra.mxu0 %v92
    %1260 = vmatprep.subr.mxu0 %v95
    %1261 = vmatpush1.msra.mxu0 %v94
    %1262 = vmatprep.subr.mxu0 %v97
    %1263 = vmatpush1.msra.mxu0 %v96
    %1264 = vmatprep.subr.mxu0 %v99
    %1265 = vmatpush1.msra.mxu0 %v98
    %1266 = vmatprep.subr.mxu0 %v101
    %1267 = vmatpush1.msra.mxu0 %v100
    %1268 = vmatprep.subr.mxu0 %v103
    %1269 = vmatpush1.msra.mxu0 %v102
    %1270 = vmatprep.subr.mxu0 0.0
    %1271 = vmatpush1.msra.mxu0 0.0
    %1272 = vmatprep.subr.mxu0 0.0
    %1273 = vmatpush1.msra.mxu0 0.0
    %1274 = vmatprep.subr.mxu0 0.0
    %1275 = vmatpush1.msra.mxu0 0.0
    %1276 = vmatprep.subr.mxu0 0.0
    %1277 = vmatpush1.msra.mxu0 0.0
    %1278 = vmatprep.subr.mxu0 0.0
    %1279 = vmatpush1.msra.mxu0 0.0
    %1280 = vmatprep.subr.mxu0 0.0
    %1281 = vmatpush1.msra.mxu0 0.0
    %1282 = vmatprep.subr.mxu0 0.0
    %1283 = vmatpush1.msra.mxu0 0.0
    %1284 = vmatprep.subr.mxu0 0.0
    %1285 = vmatpush1.msra.mxu0 0.0
    %1286 = vmatprep.subr.mxu0 0.0
    %1287 = vmatpush1.msra.mxu0 0.0
    %1288 = vmatprep.subr.mxu0 0.0
    %1289 = vmatpush1.msra.mxu0 0.0
    %1290 = vmatprep.subr.mxu0 0.0
    %1291 = vmatpush1.msra.mxu0 0.0
    %1292 = vmatprep.subr.mxu0 0.0
    %1293 = vmatpush1.msra.mxu0 0.0
    %1294 = vmatprep.subr.mxu0 0.0
    %1295 = vmatpush1.msra.mxu0 0.0
    %1296 = vmatprep.subr.mxu0 0.0
    %1297 = vmatpush1.msra.mxu0 0.0
    %1298 = vmatprep.subr.mxu0 0.0
    %1299 = vmatpush1.msra.mxu0 0.0
    %1300 = vmatprep.subr.mxu0 0.0
    %1301 = vmatpush1.msra.mxu0 0.0
    %1302 = vmatprep.mubr.f32.mxu0 0.0
    %1303 = vmatmul.mubr.f32.gmra.mrb[0].mxu0 %v1237
    %v1304 = vpop.f32.mrb[0].mxu0
    %v1305 = vadd.f32 %v109, %v1304
    %v1306 = vpop.f32.mrb[0].mxu0
    %v1307 = vadd.f32 %v113, %v1306
    %1308 = vdwg.mxu0
    %v1309 = vxor.u32 %v1305, 2147483648
    %v1310 = vxor.u32 %v1307, 2147483648
    %v1311 = vmul.f32 %v1309, 1.442695
    %v1312 = vpow.pop %v1311
    %v1313 = vmul.f32 %v1310, 1.442695
    %v1314 = vpow.pop %v1313
    %v1315 = vadd.f32 %v1312, 1.0
    %v1316 = vadd.f32 %v1314, 1.0
    %v1317 = vrcp.pop %v1315
    %v1318 = vmul.f32 1.0, %v1317
    %v1319 = vrcp.pop %v1316
    %v1320 = vmul.f32 1.0, %v1319
    %v1321 = vtanh.pop %v1307
    %v1322 = vmul.f32 %v1318, %v1114
    %1324 = vrot.lane.b32.xlu0 %v1321, 64
    %v1325 = vpop.permute.xlu0 %1324
    %v1327 = vmul.f32 %v1318, %v1325
    %1329 = vrot.lane.b32.xlu0 %v1327, 64
    %v1330 = vpop.permute.xlu0 %1329
    %v1332 = vadd.f32 %v1322, %v1330
    %v1333 = vtanh.pop %v1332
    %1335 = vrot.lane.b32.xlu0 %v1333, 64
    %v1336 = vpop.permute.xlu0 %1335
    %v1338 = vmul.f32 %v1320, %v1336
    %v1339 = vld [vmem:[#allocation2 + $0x10] sm:$0xc]
    %v1340 = vld [vmem:[#allocation2 + $0x18] sm:$0xc]
    %v1342 = vsel %vm229, %v1232, 0
    %1344 = vmatprep.subr.mxu0 %v57
    %1345 = vmatpush1.msra.mxu0 %v56
    %1346 = vmatprep.subr.mxu0 %v59
    %1347 = vmatpush1.msra.mxu0 %v58
    %1348 = vmatprep.subr.mxu0 %v61
    %1349 = vmatpush1.msra.mxu0 %v60
    %1350 = vmatprep.subr.mxu0 %v63
    %1351 = vmatpush1.msra.mxu0 %v62
    %1352 = vmatprep.subr.mxu0 %v65
    %1353 = vmatpush1.msra.mxu0 %v64
    %1354 = vmatprep.subr.mxu0 %v67
    %1355 = vmatpush1.msra.mxu0 %v66
    %1356 = vmatprep.subr.mxu0 %v69
    %1357 = vmatpush1.msra.mxu0 %v68
    %1358 = vmatprep.subr.mxu0 %v71
    %1359 = vmatpush1.msra.mxu0 %v70
    %1360 = vmatprep.subr.mxu0 0.0
    %1361 = vmatpush1.msra.mxu0 0.0
    %1362 = vmatprep.subr.mxu0 0.0
    %1363 = vmatpush1.msra.mxu0 0.0
    %1364 = vmatprep.subr.mxu0 0.0
    %1365 = vmatpush1.msra.mxu0 0.0
    %1366 = vmatprep.subr.mxu0 0.0
    %1367 = vmatpush1.msra.mxu0 0.0
    %1368 = vmatprep.subr.mxu0 0.0
    %1369 = vmatpush1.msra.mxu0 0.0
    %1370 = vmatprep.subr.mxu0 0.0
    %1371 = vmatpush1.msra.mxu0 0.0
    %1372 = vmatprep.subr.mxu0 0.0
    %1373 = vmatpush1.msra.mxu0 0.0
    %1374 = vmatprep.subr.mxu0 0.0
    %1375 = vmatpush1.msra.mxu0 0.0
    %1376 = vmatprep.subr.mxu0 0.0
    %1377 = vmatpush1.msra.mxu0 0.0
    %1378 = vmatprep.subr.mxu0 0.0
    %1379 = vmatpush1.msra.mxu0 0.0
    %1380 = vmatprep.subr.mxu0 0.0
    %1381 = vmatpush1.msra.mxu0 0.0
    %1382 = vmatprep.subr.mxu0 0.0
    %1383 = vmatpush1.msra.mxu0 0.0
    %1384 = vmatprep.subr.mxu0 0.0
    %1385 = vmatpush1.msra.mxu0 0.0
    %1386 = vmatprep.subr.mxu0 0.0
    %1387 = vmatpush1.msra.mxu0 0.0
    %1388 = vmatprep.subr.mxu0 0.0
    %1389 = vmatpush1.msra.mxu0 0.0
    %1390 = vmatprep.subr.mxu0 0.0
    %1391 = vmatpush1.msra.mxu0 0.0
    %1392 = vmatprep.subr.mxu0 0.0
    %1393 = vmatpush1.msra.mxu0 0.0
    %1394 = vmatprep.subr.mxu0 0.0
    %1395 = vmatpush1.msra.mxu0 0.0
    %1396 = vmatprep.subr.mxu0 0.0
    %1397 = vmatpush1.msra.mxu0 0.0
    %1398 = vmatprep.subr.mxu0 0.0
    %1399 = vmatpush1.msra.mxu0 0.0
    %1400 = vmatprep.subr.mxu0 0.0
    %1401 = vmatpush1.msra.mxu0 0.0
    %1402 = vmatprep.subr.mxu0 0.0
    %1403 = vmatpush1.msra.mxu0 0.0
    %1404 = vmatprep.subr.mxu0 0.0
    %1405 = vmatpush1.msra.mxu0 0.0
    %1406 = vmatprep.subr.mxu0 0.0
    %1407 = vmatpush1.msra.mxu0 0.0
    %1408 = vmatprep.mubr.f32.mxu0 0.0
    %1409 = vmatmul.mubr.f32.gmra.mrb[0].mxu0 %v1342
    %v1410 = vpop.f32.mrb[0].mxu0
    %v1411 = vadd.f32 0.0, %v1410
    %v1412 = vpop.f32.mrb[0].mxu0
    %v1413 = vadd.f32 0.0, %v1412
    %1414 = vdwg.mxu0
    %v1417 = vrot.slane %v1411, 6
    %v1418 = vrot.slane %v1413, 6
    %v1421 = vadd.f32 %v1339, %v1417
    %v1422 = vadd.f32 %v1340, %v1418
    %v1423 = vxor.u32 %v1421, 2147483648
    %v1424 = vxor.u32 %v1422, 2147483648
    %v1425 = vmul.f32 %v1423, 1.442695
    %v1426 = vpow.pop %v1425
    %v1427 = vmul.f32 %v1424, 1.442695
    %v1428 = vpow.pop %v1427
    %v1429 = vadd.f32 %v1426, 1.0
    %v1430 = vadd.f32 %v1428, 1.0
    %v1431 = vrcp.pop %v1429
    %v1432 = vmul.f32 1.0, %v1431
    %v1433 = vrcp.pop %v1430
    %v1434 = vmul.f32 1.0, %v1433
    %v1435 = vtanh.pop %v1422
    %v1437 = vrot.slane %v1226, 6
    %v1439 = vmul.f32 %v1432, %v1437
    %1441 = vrot.lane.b32.xlu0 %v1435, 64
    %v1442 = vpop.permute.xlu0 %1441
    %v1444 = vmul.f32 %v1432, %v1442
    %1446 = vrot.lane.b32.xlu0 %v1444, 64
    %v1447 = vpop.permute.xlu0 %1446
    %v1449 = vadd.f32 %v1439, %v1447
    %v1450 = vtanh.pop %v1449
    %1452 = vrot.lane.b32.xlu0 %v1450, 64
    %v1453 = vpop.permute.xlu0 %1452
    %v1455 = vmul.f32 %v1434, %v1453
    %v1457 = vrot.slane %v1338, 6
    %1458 = vrot.lane.b32.xlu0 %v1457, 64
    %v1459 = vpop.permute.xlu0 %1458
    %v1461 = vsel %vm229, %v1455, %v1459
    %v1463 = vrot.slane %v1461, 2
    %1465 = vmatprep.subr.mxu0 %v73
    %1466 = vmatpush1.msra.mxu0 %v72
    %1467 = vmatprep.subr.mxu0 %v75
    %1468 = vmatpush1.msra.mxu0 %v74
    %1469 = vmatprep.subr.mxu0 %v77
    %1470 = vmatpush1.msra.mxu0 %v76
    %1471 = vmatprep.subr.mxu0 %v79
    %1472 = vmatpush1.msra.mxu0 %v78
    %1473 = vmatprep.subr.mxu0 %v81
    %1474 = vmatpush1.msra.mxu0 %v80
    %1475 = vmatprep.subr.mxu0 %v83
    %1476 = vmatpush1.msra.mxu0 %v82
    %1477 = vmatprep.subr.mxu0 %v85
    %1478 = vmatpush1.msra.mxu0 %v84
    %1479 = vmatprep.subr.mxu0 %v87
    %1480 = vmatpush1.msra.mxu0 %v86
    %1481 = vmatprep.subr.mxu0 %v89
    %1482 = vmatpush1.msra.mxu0 %v88
    %1483 = vmatprep.subr.mxu0 %v91
    %1484 = vmatpush1.msra.mxu0 %v90
    %1485 = vmatprep.subr.mxu0 %v93
    %1486 = vmatpush1.msra.mxu0 %v92
    %1487 = vmatprep.subr.mxu0 %v95
    %1488 = vmatpush1.msra.mxu0 %v94
    %1489 = vmatprep.subr.mxu0 %v97
    %1490 = vmatpush1.msra.mxu0 %v96
    %1491 = vmatprep.subr.mxu0 %v99
    %1492 = vmatpush1.msra.mxu0 %v98
    %1493 = vmatprep.subr.mxu0 %v101
    %1494 = vmatpush1.msra.mxu0 %v100
    %1495 = vmatprep.subr.mxu0 %v103
    %1496 = vmatpush1.msra.mxu0 %v102
    %1497 = vmatprep.subr.mxu0 0.0
    %1498 = vmatpush1.msra.mxu0 0.0
    %1499 = vmatprep.subr.mxu0 0.0
    %1500 = vmatpush1.msra.mxu0 0.0
    %1501 = vmatprep.subr.mxu0 0.0
    %1502 = vmatpush1.msra.mxu0 0.0
    %1503 = vmatprep.subr.mxu0 0.0
    %1504 = vmatpush1.msra.mxu0 0.0
    %1505 = vmatprep.subr.mxu0 0.0
    %1506 = vmatpush1.msra.mxu0 0.0
    %1507 = vmatprep.subr.mxu0 0.0
    %1508 = vmatpush1.msra.mxu0 0.0
    %1509 = vmatprep.subr.mxu0 0.0
    %1510 = vmatpush1.msra.mxu0 0.0
    %1511 = vmatprep.subr.mxu0 0.0
    %1512 = vmatpush1.msra.mxu0 0.0
    %1513 = vmatprep.subr.mxu0 0.0
    %1514 = vmatpush1.msra.mxu0 0.0
    %1515 = vmatprep.subr.mxu0 0.0
    %1516 = vmatpush1.msra.mxu0 0.0
    %1517 = vmatprep.subr.mxu0 0.0
    %1518 = vmatpush1.msra.mxu0 0.0
    %1519 = vmatprep.subr.mxu0 0.0
    %1520 = vmatpush1.msra.mxu0 0.0
    %1521 = vmatprep.subr.mxu0 0.0
    %1522 = vmatpush1.msra.mxu0 0.0
    %1523 = vmatprep.subr.mxu0 0.0
    %1524 = vmatpush1.msra.mxu0 0.0
    %1525 = vmatprep.subr.mxu0 0.0
    %1526 = vmatpush1.msra.mxu0 0.0
    %1527 = vmatprep.subr.mxu0 0.0
    %1528 = vmatpush1.msra.mxu0 0.0
    %1529 = vmatprep.mubr.f32.mxu0 0.0
    %1530 = vmatmul.mubr.f32.gmra.mrb[0].mxu0 %v1463
    %v1531 = vpop.f32.mrb[0].mxu0
    %v1532 = vadd.f32 %v109, %v1531
    %v1533 = vpop.f32.mrb[0].mxu0
    %v1534 = vadd.f32 %v113, %v1533
    %1535 = vdwg.mxu0
    %v1536 = vxor.u32 %v1532, 2147483648
    %v1537 = vxor.u32 %v1534, 2147483648
    %v1538 = vmul.f32 %v1536, 1.442695
    %v1539 = vpow.pop %v1538
    %v1540 = vmul.f32 %v1537, 1.442695
    %v1541 = vpow.pop %v1540
    %v1542 = vadd.f32 %v1539, 1.0
    %v1543 = vadd.f32 %v1541, 1.0
    %v1544 = vrcp.pop %v1542
    %v1545 = vmul.f32 1.0, %v1544
    %v1546 = vrcp.pop %v1543
    %v1547 = vmul.f32 1.0, %v1546
    %v1548 = vtanh.pop %v1534
    %v1549 = vmul.f32 %v1545, %v1332
    %1551 = vrot.lane.b32.xlu0 %v1548, 64
    %v1552 = vpop.permute.xlu0 %1551
    %v1554 = vmul.f32 %v1545, %v1552
    %1556 = vrot.lane.b32.xlu0 %v1554, 64
    %v1557 = vpop.permute.xlu0 %1556
    %v1559 = vadd.f32 %v1549, %v1557
    %v1560 = vtanh.pop %v1559
    %1562 = vrot.lane.b32.xlu0 %v1560, 64
    %v1563 = vpop.permute.xlu0 %1562
    %v1565 = vmul.f32 %v1547, %v1563
    %v1566 = vld [vmem:[#allocation2 + $0x10] sm:$0x30]
    %v1567 = vld [vmem:[#allocation2 + $0x18] sm:$0x30]
    %v1569 = vrot.slane %v1455, 2
    %v1570 = vsel %vm229, %v1569, 0
    %1572 = vmatprep.subr.mxu0 %v57
    %1573 = vmatpush1.msra.mxu0 %v56
    %1574 = vmatprep.subr.mxu0 %v59
    %1575 = vmatpush1.msra.mxu0 %v58
    %1576 = vmatprep.subr.mxu0 %v61
    %1577 = vmatpush1.msra.mxu0 %v60
    %1578 = vmatprep.subr.mxu0 %v63
    %1579 = vmatpush1.msra.mxu0 %v62
    %1580 = vmatprep.subr.mxu0 %v65
    %1581 = vmatpush1.msra.mxu0 %v64
    %1582 = vmatprep.subr.mxu0 %v67
    %1583 = vmatpush1.msra.mxu0 %v66
    %1584 = vmatprep.subr.mxu0 %v69
    %1585 = vmatpush1.msra.mxu0 %v68
    %1586 = vmatprep.subr.mxu0 %v71
    %1587 = vmatpush1.msra.mxu0 %v70
    %1588 = vmatprep.subr.mxu0 0.0
    %1589 = vmatpush1.msra.mxu0 0.0
    %1590 = vmatprep.subr.mxu0 0.0
    %1591 = vmatpush1.msra.mxu0 0.0
    %1592 = vmatprep.subr.mxu0 0.0
    %1593 = vmatpush1.msra.mxu0 0.0
    %1594 = vmatprep.subr.mxu0 0.0
    %1595 = vmatpush1.msra.mxu0 0.0
    %1596 = vmatprep.subr.mxu0 0.0
    %1597 = vmatpush1.msra.mxu0 0.0
    %1598 = vmatprep.subr.mxu0 0.0
    %1599 = vmatpush1.msra.mxu0 0.0
    %1600 = vmatprep.subr.mxu0 0.0
    %1601 = vmatpush1.msra.mxu0 0.0
    %1602 = vmatprep.subr.mxu0 0.0
    %1603 = vmatpush1.msra.mxu0 0.0
    %1604 = vmatprep.subr.mxu0 0.0
    %1605 = vmatpush1.msra.mxu0 0.0
    %1606 = vmatprep.subr.mxu0 0.0
    %1607 = vmatpush1.msra.mxu0 0.0
    %1608 = vmatprep.subr.mxu0 0.0
    %1609 = vmatpush1.msra.mxu0 0.0
    %1610 = vmatprep.subr.mxu0 0.0
    %1611 = vmatpush1.msra.mxu0 0.0
    %1612 = vmatprep.subr.mxu0 0.0
    %1613 = vmatpush1.msra.mxu0 0.0
    %1614 = vmatprep.subr.mxu0 0.0
    %1615 = vmatpush1.msra.mxu0 0.0
    %1616 = vmatprep.subr.mxu0 0.0
    %1617 = vmatpush1.msra.mxu0 0.0
    %1618 = vmatprep.subr.mxu0 0.0
    %1619 = vmatpush1.msra.mxu0 0.0
    %1620 = vmatprep.subr.mxu0 0.0
    %1621 = vmatpush1.msra.mxu0 0.0
    %1622 = vmatprep.subr.mxu0 0.0
    %1623 = vmatpush1.msra.mxu0 0.0
    %1624 = vmatprep.subr.mxu0 0.0
    %1625 = vmatpush1.msra.mxu0 0.0
    %1626 = vmatprep.subr.mxu0 0.0
    %1627 = vmatpush1.msra.mxu0 0.0
    %1628 = vmatprep.subr.mxu0 0.0
    %1629 = vmatpush1.msra.mxu0 0.0
    %1630 = vmatprep.subr.mxu0 0.0
    %1631 = vmatpush1.msra.mxu0 0.0
    %1632 = vmatprep.subr.mxu0 0.0
    %1633 = vmatpush1.msra.mxu0 0.0
    %1634 = vmatprep.subr.mxu0 0.0
    %1635 = vmatpush1.msra.mxu0 0.0
    %1636 = vmatprep.mubr.f32.mxu0 0.0
    %1637 = vmatmul.mubr.f32.gmra.mrb[0].mxu0 %v1570
    %v1638 = vpop.f32.mrb[0].mxu0
    %v1639 = vadd.f32 0.0, %v1638
    %v1640 = vpop.f32.mrb[0].mxu0
    %v1641 = vadd.f32 0.0, %v1640
    %1642 = vdwg.mxu0
    %v1645 = vrot.slane %v1639, 4
    %v1646 = vrot.slane %v1641, 4
    %v1649 = vadd.f32 %v1566, %v1645
    %v1650 = vadd.f32 %v1567, %v1646
    %v1651 = vxor.u32 %v1649, 2147483648
    %v1652 = vxor.u32 %v1650, 2147483648
    %v1653 = vmul.f32 %v1651, 1.442695
    %v1654 = vpow.pop %v1653
    %v1655 = vmul.f32 %v1652, 1.442695
    %v1656 = vpow.pop %v1655
    %v1657 = vadd.f32 %v1654, 1.0
    %v1658 = vadd.f32 %v1656, 1.0
    %v1659 = vrcp.pop %v1657
    %v1660 = vmul.f32 1.0, %v1659
    %v1661 = vrcp.pop %v1658
    %v1662 = vmul.f32 1.0, %v1661
    %v1663 = vtanh.pop %v1650
    %v1665 = vrot.slane %v1449, 6
    %v1667 = vmul.f32 %v1660, %v1665
    %1669 = vrot.lane.b32.xlu0 %v1663, 64
    %v1670 = vpop.permute.xlu0 %1669
    %v1672 = vmul.f32 %v1660, %v1670
    %1674 = vrot.lane.b32.xlu0 %v1672, 64
    %v1675 = vpop.permute.xlu0 %1674
    %v1677 = vadd.f32 %v1667, %v1675
    %v1678 = vtanh.pop %v1677
    %1680 = vrot.lane.b32.xlu0 %v1678, 64
    %v1681 = vpop.permute.xlu0 %1680
    %v1683 = vmul.f32 %v1662, %v1681
    %v1685 = vrot.slane %v1565, 4
    %1686 = vrot.lane.b32.xlu0 %v1685, 64
    %v1687 = vpop.permute.xlu0 %1686
    %v1689 = vsel %vm229, %v1683, %v1687
    %v1691 = vrot.slane %v1689, 4
    %1693 = vmatprep.subr.mxu0 %v73
    %1694 = vmatpush1.msra.mxu0 %v72
    %1695 = vmatprep.subr.mxu0 %v75
    %1696 = vmatpush1.msra.mxu0 %v74
    %1697 = vmatprep.subr.mxu0 %v77
    %1698 = vmatpush1.msra.mxu0 %v76
    %1699 = vmatprep.subr.mxu0 %v79
    %1700 = vmatpush1.msra.mxu0 %v78
    %1701 = vmatprep.subr.mxu0 %v81
    %1702 = vmatpush1.msra.mxu0 %v80
    %1703 = vmatprep.subr.mxu0 %v83
    %1704 = vmatpush1.msra.mxu0 %v82
    %1705 = vmatprep.subr.mxu0 %v85
    %1706 = vmatpush1.msra.mxu0 %v84
    %1707 = vmatprep.subr.mxu0 %v87
    %1708 = vmatpush1.msra.mxu0 %v86
    %1709 = vmatprep.subr.mxu0 %v89
    %1710 = vmatpush1.msra.mxu0 %v88
    %1711 = vmatprep.subr.mxu0 %v91
    %1712 = vmatpush1.msra.mxu0 %v90
    %1713 = vmatprep.subr.mxu0 %v93
    %1714 = vmatpush1.msra.mxu0 %v92
    %1715 = vmatprep.subr.mxu0 %v95
    %1716 = vmatpush1.msra.mxu0 %v94
    %1717 = vmatprep.subr.mxu0 %v97
    %1718 = vmatpush1.msra.mxu0 %v96
    %1719 = vmatprep.subr.mxu0 %v99
    %1720 = vmatpush1.msra.mxu0 %v98
    %1721 = vmatprep.subr.mxu0 %v101
    %1722 = vmatpush1.msra.mxu0 %v100
    %1723 = vmatprep.subr.mxu0 %v103
    %1724 = vmatpush1.msra.mxu0 %v102
    %1725 = vmatprep.subr.mxu0 0.0
    %1726 = vmatpush1.msra.mxu0 0.0
    %1727 = vmatprep.subr.mxu0 0.0
    %1728 = vmatpush1.msra.mxu0 0.0
    %1729 = vmatprep.subr.mxu0 0.0
    %1730 = vmatpush1.msra.mxu0 0.0
    %1731 = vmatprep.subr.mxu0 0.0
    %1732 = vmatpush1.msra.mxu0 0.0
    %1733 = vmatprep.subr.mxu0 0.0
    %1734 = vmatpush1.msra.mxu0 0.0
    %1735 = vmatprep.subr.mxu0 0.0
    %1736 = vmatpush1.msra.mxu0 0.0
    %1737 = vmatprep.subr.mxu0 0.0
    %1738 = vmatpush1.msra.mxu0 0.0
    %1739 = vmatprep.subr.mxu0 0.0
    %1740 = vmatpush1.msra.mxu0 0.0
    %1741 = vmatprep.subr.mxu0 0.0
    %1742 = vmatpush1.msra.mxu0 0.0
    %1743 = vmatprep.subr.mxu0 0.0
    %1744 = vmatpush1.msra.mxu0 0.0
    %1745 = vmatprep.subr.mxu0 0.0
    %1746 = vmatpush1.msra.mxu0 0.0
    %1747 = vmatprep.subr.mxu0 0.0
    %1748 = vmatpush1.msra.mxu0 0.0
    %1749 = vmatprep.subr.mxu0 0.0
    %1750 = vmatpush1.msra.mxu0 0.0
    %1751 = vmatprep.subr.mxu0 0.0
    %1752 = vmatpush1.msra.mxu0 0.0
    %1753 = vmatprep.subr.mxu0 0.0
    %1754 = vmatpush1.msra.mxu0 0.0
    %1755 = vmatprep.subr.mxu0 0.0
    %1756 = vmatpush1.msra.mxu0 0.0
    %1757 = vmatprep.mubr.f32.mxu0 0.0
    %1758 = vmatmul.mubr.f32.gmra.mrb[0].mxu0 %v1691
    %v1759 = vpop.f32.mrb[0].mxu0
    %v1760 = vadd.f32 %v109, %v1759
    %v1761 = vpop.f32.mrb[0].mxu0
    %v1762 = vadd.f32 %v113, %v1761
    %1763 = vdwg.mxu0
    %v1764 = vxor.u32 %v1760, 2147483648
    %v1765 = vxor.u32 %v1762, 2147483648
    %v1766 = vmul.f32 %v1764, 1.442695
    %v1767 = vpow.pop %v1766
    %v1768 = vmul.f32 %v1765, 1.442695
    %v1769 = vpow.pop %v1768
    %v1770 = vadd.f32 %v1767, 1.0
    %v1771 = vadd.f32 %v1769, 1.0
    %v1772 = vrcp.pop %v1770
    %v1773 = vmul.f32 1.0, %v1772
    %v1774 = vrcp.pop %v1771
    %v1775 = vmul.f32 1.0, %v1774
    %v1776 = vtanh.pop %v1762
    %v1777 = vmul.f32 %v1773, %v1559
    %1779 = vrot.lane.b32.xlu0 %v1776, 64
    %v1780 = vpop.permute.xlu0 %1779
    %v1782 = vmul.f32 %v1773, %v1780
    %1784 = vrot.lane.b32.xlu0 %v1782, 64
    %v1785 = vpop.permute.xlu0 %1784
    %v1787 = vadd.f32 %v1777, %v1785
    %v1788 = vtanh.pop %v1787
    %1790 = vrot.lane.b32.xlu0 %v1788, 64
    %v1791 = vpop.permute.xlu0 %1790
    %v1793 = vmul.f32 %v1775, %v1791
    %v1794 = vld [vmem:[#allocation2 + $0x10] sm:$0xc0]
    %v1795 = vld [vmem:[#allocation2 + $0x18] sm:$0xc0]
    %v1797 = vrot.slane %v1683, 4
    %v1798 = vsel %vm229, %v1797, 0
    %1800 = vmatprep.subr.mxu0 %v57
    %1801 = vmatpush1.msra.mxu0 %v56
    %1802 = vmatprep.subr.mxu0 %v59
    %1803 = vmatpush1.msra.mxu0 %v58
    %1804 = vmatprep.subr.mxu0 %v61
    %1805 = vmatpush1.msra.mxu0 %v60
    %1806 = vmatprep.subr.mxu0 %v63
    %1807 = vmatpush1.msra.mxu0 %v62
    %1808 = vmatprep.subr.mxu0 %v65
    %1809 = vmatpush1.msra.mxu0 %v64
    %1810 = vmatprep.subr.mxu0 %v67
    %1811 = vmatpush1.msra.mxu0 %v66
    %1812 = vmatprep.subr.mxu0 %v69
    %1813 = vmatpush1.msra.mxu0 %v68
    %1814 = vmatprep.subr.mxu0 %v71
    %1815 = vmatpush1.msra.mxu0 %v70
    %1816 = vmatprep.subr.mxu0 0.0
    %1817 = vmatpush1.msra.mxu0 0.0
    %1818 = vmatprep.subr.mxu0 0.0
    %1819 = vmatpush1.msra.mxu0 0.0
    %1820 = vmatprep.subr.mxu0 0.0
    %1821 = vmatpush1.msra.mxu0 0.0
    %1822 = vmatprep.subr.mxu0 0.0
    %1823 = vmatpush1.msra.mxu0 0.0
    %1824 = vmatprep.subr.mxu0 0.0
    %1825 = vmatpush1.msra.mxu0 0.0
    %1826 = vmatprep.subr.mxu0 0.0
    %1827 = vmatpush1.msra.mxu0 0.0
    %1828 = vmatprep.subr.mxu0 0.0
    %1829 = vmatpush1.msra.mxu0 0.0
    %1830 = vmatprep.subr.mxu0 0.0
    %1831 = vmatpush1.msra.mxu0 0.0
    %1832 = vmatprep.subr.mxu0 0.0
    %1833 = vmatpush1.msra.mxu0 0.0
    %1834 = vmatprep.subr.mxu0 0.0
    %1835 = vmatpush1.msra.mxu0 0.0
    %1836 = vmatprep.subr.mxu0 0.0
    %1837 = vmatpush1.msra.mxu0 0.0
    %1838 = vmatprep.subr.mxu0 0.0
    %1839 = vmatpush1.msra.mxu0 0.0
    %1840 = vmatprep.subr.mxu0 0.0
    %1841 = vmatpush1.msra.mxu0 0.0
    %1842 = vmatprep.subr.mxu0 0.0
    %1843 = vmatpush1.msra.mxu0 0.0
    %1844 = vmatprep.subr.mxu0 0.0
    %1845 = vmatpush1.msra.mxu0 0.0
    %1846 = vmatprep.subr.mxu0 0.0
    %1847 = vmatpush1.msra.mxu0 0.0
    %1848 = vmatprep.subr.mxu0 0.0
    %1849 = vmatpush1.msra.mxu0 0.0
    %1850 = vmatprep.subr.mxu0 0.0
    %1851 = vmatpush1.msra.mxu0 0.0
    %1852 = vmatprep.subr.mxu0 0.0
    %1853 = vmatpush1.msra.mxu0 0.0
    %1854 = vmatprep.subr.mxu0 0.0
    %1855 = vmatpush1.msra.mxu0 0.0
    %1856 = vmatprep.subr.mxu0 0.0
    %1857 = vmatpush1.msra.mxu0 0.0
    %1858 = vmatprep.subr.mxu0 0.0
    %1859 = vmatpush1.msra.mxu0 0.0
    %1860 = vmatprep.subr.mxu0 0.0
    %1861 = vmatpush1.msra.mxu0 0.0
    %1862 = vmatprep.subr.mxu0 0.0
    %1863 = vmatpush1.msra.mxu0 0.0
    %1864 = vmatprep.mubr.f32.mxu0 0.0
    %1865 = vmatmul.mubr.f32.gmra.mrb[0].mxu0 %v1798
    %v1866 = vpop.f32.mrb[0].mxu0
    %v1867 = vadd.f32 0.0, %v1866
    %v1868 = vpop.f32.mrb[0].mxu0
    %v1869 = vadd.f32 0.0, %v1868
    %1870 = vdwg.mxu0
    %v1873 = vrot.slane %v1867, 2
    %v1874 = vrot.slane %v1869, 2
    %v1877 = vadd.f32 %v1794, %v1873
    %v1878 = vadd.f32 %v1795, %v1874
    %v1879 = vxor.u32 %v1877, 2147483648
    %v1880 = vxor.u32 %v1878, 2147483648
    %v1881 = vmul.f32 %v1879, 1.442695
    %v1882 = vpow.pop %v1881
    %v1883 = vmul.f32 %v1880, 1.442695
    %v1884 = vpow.pop %v1883
    %v1885 = vadd.f32 %v1882, 1.0
    %v1886 = vadd.f32 %v1884, 1.0
    %v1887 = vrcp.pop %v1885
    %v1888 = vmul.f32 1.0, %v1887
    %v1889 = vrcp.pop %v1886
    %v1890 = vmul.f32 1.0, %v1889
    %v1891 = vtanh.pop %v1878
    %v1893 = vrot.slane %v1677, 6
    %v1895 = vmul.f32 %v1888, %v1893
    %1897 = vrot.lane.b32.xlu0 %v1891, 64
    %v1898 = vpop.permute.xlu0 %1897
    %v1900 = vmul.f32 %v1888, %v1898
    %1902 = vrot.lane.b32.xlu0 %v1900, 64
    %v1903 = vpop.permute.xlu0 %1902
    %v1905 = vadd.f32 %v1895, %v1903
    %v1906 = vtanh.pop %v1905
    %1908 = vrot.lane.b32.xlu0 %v1906, 64
    %v1909 = vpop.permute.xlu0 %1908
    %v1911 = vmul.f32 %v1890, %v1909
    %v1913 = vrot.slane %v1793, 2
    %1914 = vrot.lane.b32.xlu0 %v1913, 64
    %v1915 = vpop.permute.xlu0 %1914
    %v1917 = vsel %vm229, %v1911, %v1915
    %v1919 = vrot.slane %v1917, 6
    %1921 = vmatprep.subr.mxu0 %v73
    %1922 = vmatpush1.msra.mxu0 %v72
    %1923 = vmatprep.subr.mxu0 %v75
    %1924 = vmatpush1.msra.mxu0 %v74
    %1925 = vmatprep.subr.mxu0 %v77
    %1926 = vmatpush1.msra.mxu0 %v76
    %1927 = vmatprep.subr.mxu0 %v79
    %1928 = vmatpush1.msra.mxu0 %v78
    %1929 = vmatprep.subr.mxu0 %v81
    %1930 = vmatpush1.msra.mxu0 %v80
    %1931 = vmatprep.subr.mxu0 %v83
    %1932 = vmatpush1.msra.mxu0 %v82
    %1933 = vmatprep.subr.mxu0 %v85
    %1934 = vmatpush1.msra.mxu0 %v84
    %1935 = vmatprep.subr.mxu0 %v87
    %1936 = vmatpush1.msra.mxu0 %v86
    %1937 = vmatprep.subr.mxu0 %v89
    %1938 = vmatpush1.msra.mxu0 %v88
    %1939 = vmatprep.subr.mxu0 %v91
    %1940 = vmatpush1.msra.mxu0 %v90
    %1941 = vmatprep.subr.mxu0 %v93
    %1942 = vmatpush1.msra.mxu0 %v92
    %1943 = vmatprep.subr.mxu0 %v95
    %1944 = vmatpush1.msra.mxu0 %v94
    %1945 = vmatprep.subr.mxu0 %v97
    %1946 = vmatpush1.msra.mxu0 %v96
    %1947 = vmatprep.subr.mxu0 %v99
    %1948 = vmatpush1.msra.mxu0 %v98
    %1949 = vmatprep.subr.mxu0 %v101
    %1950 = vmatpush1.msra.mxu0 %v100
    %1951 = vmatprep.subr.mxu0 %v103
    %1952 = vmatpush1.msra.mxu0 %v102
    %1953 = vmatprep.subr.mxu0 0.0
    %1954 = vmatpush1.msra.mxu0 0.0
    %1955 = vmatprep.subr.mxu0 0.0
    %1956 = vmatpush1.msra.mxu0 0.0
    %1957 = vmatprep.subr.mxu0 0.0
    %1958 = vmatpush1.msra.mxu0 0.0
    %1959 = vmatprep.subr.mxu0 0.0
    %1960 = vmatpush1.msra.mxu0 0.0
    %1961 = vmatprep.subr.mxu0 0.0
    %1962 = vmatpush1.msra.mxu0 0.0
    %1963 = vmatprep.subr.mxu0 0.0
    %1964 = vmatpush1.msra.mxu0 0.0
    %1965 = vmatprep.subr.mxu0 0.0
    %1966 = vmatpush1.msra.mxu0 0.0
    %1967 = vmatprep.subr.mxu0 0.0
    %1968 = vmatpush1.msra.mxu0 0.0
    %1969 = vmatprep.subr.mxu0 0.0
    %1970 = vmatpush1.msra.mxu0 0.0
    %1971 = vmatprep.subr.mxu0 0.0
    %1972 = vmatpush1.msra.mxu0 0.0
    %1973 = vmatprep.subr.mxu0 0.0
    %1974 = vmatpush1.msra.mxu0 0.0
    %1975 = vmatprep.subr.mxu0 0.0
    %1976 = vmatpush1.msra.mxu0 0.0
    %1977 = vmatprep.subr.mxu0 0.0
    %1978 = vmatpush1.msra.mxu0 0.0
    %1979 = vmatprep.subr.mxu0 0.0
    %1980 = vmatpush1.msra.mxu0 0.0
    %1981 = vmatprep.subr.mxu0 0.0
    %1982 = vmatpush1.msra.mxu0 0.0
    %1983 = vmatprep.subr.mxu0 0.0
    %1984 = vmatpush1.msra.mxu0 0.0
    %1985 = vmatprep.mubr.f32.mxu0 0.0
    %1986 = vmatmul.mubr.f32.gmra.mrb[0].mxu0 %v1919
    %v1987 = vpop.f32.mrb[0].mxu0
    %v1988 = vadd.f32 %v109, %v1987
    %v1989 = vpop.f32.mrb[0].mxu0
    %v1990 = vadd.f32 %v113, %v1989
    %1991 = vdwg.mxu0
    %v1992 = vxor.u32 %v1988, 2147483648
    %v1993 = vxor.u32 %v1990, 2147483648
    %v1994 = vmul.f32 %v1992, 1.442695
    %v1995 = vpow.pop %v1994
    %v1996 = vmul.f32 %v1993, 1.442695
    %v1997 = vpow.pop %v1996
    %v1998 = vadd.f32 %v1995, 1.0
    %v1999 = vadd.f32 %v1997, 1.0
    %v2000 = vrcp.pop %v1998
    %v2001 = vmul.f32 1.0, %v2000
    %v2002 = vrcp.pop %v1999
    %v2003 = vmul.f32 1.0, %v2002
    %v2004 = vtanh.pop %v1990
    %v2005 = vmul.f32 %v2001, %v1787
    %2007 = vrot.lane.b32.xlu0 %v2004, 64
    %v2008 = vpop.permute.xlu0 %2007
    %v2010 = vmul.f32 %v2001, %v2008
    %2012 = vrot.lane.b32.xlu0 %v2010, 64
    %v2013 = vpop.permute.xlu0 %2012
    %v2015 = vadd.f32 %v2005, %v2013
    %v2016 = vtanh.pop %v2015
    %2018 = vrot.lane.b32.xlu0 %v2016, 64
    %v2019 = vpop.permute.xlu0 %2018
    %v2021 = vmul.f32 %v2003, %v2019
    %v2022 = vld [vmem:[%s6] sm:$0xff]
    %v2023 = vld [vmem:[%s6 + $0x8] sm:$0xff]
    %v2024 = vld [vmem:[%s6 + $0x10] sm:$0xff]
    %v2025 = vld [vmem:[%s6 + $0x18] sm:$0xff]
    %v2026 = vld [vmem:[%s6 + $0x20] sm:$0xff]
    %v2027 = vld [vmem:[%s6 + $0x28] sm:$0xff]
    %v2028 = vld [vmem:[%s6 + $0x30] sm:$0xff]
    %v2029 = vld [vmem:[%s6 + $0x38] sm:$0xff]
    %v2030 = vld [vmem:[%s7] sm:$0x1]
    %v2032 = vlaneseq
    %v2033 = vshrl.u32 %v2032, 7
    %v2034 = vsub.s32 0, %v2033
    %v2035 = vrot.slane %v2030, %v2034
    %v2038 = vsel %vm229, %v2021, 0
    %2040 = vmatprep.subr.mxu0 0.0
    %2041 = vmatpush1.msra.mxu0 %v2022
    %2042 = vmatprep.subr.mxu0 0.0
    %2043 = vmatpush1.msra.mxu0 %v2023
    %2044 = vmatprep.subr.mxu0 0.0
    %2045 = vmatpush1.msra.mxu0 %v2024
    %2046 = vmatprep.subr.mxu0 0.0
    %2047 = vmatpush1.msra.mxu0 %v2025
    %2048 = vmatprep.subr.mxu0 0.0
    %2049 = vmatpush1.msra.mxu0 %v2026
    %2050 = vmatprep.subr.mxu0 0.0
    %2051 = vmatpush1.msra.mxu0 %v2027
    %2052 = vmatprep.subr.mxu0 0.0
    %2053 = vmatpush1.msra.mxu0 %v2028
    %2054 = vmatprep.subr.mxu0 0.0
    %2055 = vmatpush1.msra.mxu0 %v2029
    %2056 = vmatprep.subr.mxu0 0.0
    %2057 = vmatpush1.msra.mxu0 0.0
    %2058 = vmatprep.subr.mxu0 0.0
    %2059 = vmatpush1.msra.mxu0 0.0
    %2060 = vmatprep.subr.mxu0 0.0
    %2061 = vmatpush1.msra.mxu0 0.0
    %2062 = vmatprep.subr.mxu0 0.0
    %2063 = vmatpush1.msra.mxu0 0.0
    %2064 = vmatprep.subr.mxu0 0.0
    %2065 = vmatpush1.msra.mxu0 0.0
    %2066 = vmatprep.subr.mxu0 0.0
    %2067 = vmatpush1.msra.mxu0 0.0
    %2068 = vmatprep.subr.mxu0 0.0
    %2069 = vmatpush1.msra.mxu0 0.0
    %2070 = vmatprep.subr.mxu0 0.0
    %2071 = vmatpush1.msra.mxu0 0.0
    %2072 = vmatprep.subr.mxu0 0.0
    %2073 = vmatpush1.msra.mxu0 0.0
    %2074 = vmatprep.subr.mxu0 0.0
    %2075 = vmatpush1.msra.mxu0 0.0
    %2076 = vmatprep.subr.mxu0 0.0
    %2077 = vmatpush1.msra.mxu0 0.0
    %2078 = vmatprep.subr.mxu0 0.0
    %2079 = vmatpush1.msra.mxu0 0.0
    %2080 = vmatprep.subr.mxu0 0.0
    %2081 = vmatpush1.msra.mxu0 0.0
    %2082 = vmatprep.subr.mxu0 0.0
    %2083 = vmatpush1.msra.mxu0 0.0
    %2084 = vmatprep.subr.mxu0 0.0
    %2085 = vmatpush1.msra.mxu0 0.0
    %2086 = vmatprep.subr.mxu0 0.0
    %2087 = vmatpush1.msra.mxu0 0.0
    %2088 = vmatprep.subr.mxu0 0.0
    %2089 = vmatpush1.msra.mxu0 0.0
    %2090 = vmatprep.subr.mxu0 0.0
    %2091 = vmatpush1.msra.mxu0 0.0
    %2092 = vmatprep.subr.mxu0 0.0
    %2093 = vmatpush1.msra.mxu0 0.0
    %2094 = vmatprep.subr.mxu0 0.0
    %2095 = vmatpush1.msra.mxu0 0.0
    %2096 = vmatprep.subr.mxu0 0.0
    %2097 = vmatpush1.msra.mxu0 0.0
    %2098 = vmatprep.subr.mxu0 0.0
    %2099 = vmatpush1.msra.mxu0 0.0
    %2100 = vmatprep.subr.mxu0 0.0
    %2101 = vmatpush1.msra.mxu0 0.0
    %2102 = vmatprep.subr.mxu0 0.0
    %2103 = vmatpush1.msra.mxu0 0.0
    %2104 = vmatprep.mubr.f32.mxu0 0.0
    %2105 = vmatmul.mubr.f32.gmra.mrb[0].mxu0 %v2038
    %v2106 = vpop.f32.mrb[0].mxu0
    %v2107 = vadd.f32 %v2035, %v2106
    %v2108 = vpop.f32.mrb[0].mxu0
    %2109 = vdwg.mxu0
    %v2110 = vmax.f32 %v2107, 0.0
    %v2111 = vld [vmem:[%s8] sm:$0xff]
    %v2112 = vld [vmem:[%s8 + $0x8] sm:$0xff]
    %v2113 = vld [vmem:[%s8 + $0x10] sm:$0xff]
    %v2114 = vld [vmem:[%s8 + $0x18] sm:$0xff]
    %v2115 = vld [vmem:[%s9] sm:$0x1]
    %v2117 = vlaneseq
    %v2118 = vshrl.u32 %v2117, 7
    %v2119 = vsub.s32 0, %v2118
    %v2120 = vrot.slane %v2115, %v2119
    %vm2122 = vcmask 261120
    %v2124 = vsel %vm2122, %v2110, 0
    %2126 = vmatprep.subr.mxu0 0.0
    %2127 = vmatpush1.msra.mxu0 %v2111
    %2128 = vmatprep.subr.mxu0 0.0
    %2129 = vmatpush1.msra.mxu0 %v2112
    %2130 = vmatprep.subr.mxu0 0.0
    %2131 = vmatpush1.msra.mxu0 %v2113
    %2132 = vmatprep.subr.mxu0 0.0
    %2133 = vmatpush1.msra.mxu0 %v2114
    %2134 = vmatprep.subr.mxu0 0.0
    %2135 = vmatpush1.msra.mxu0 0.0
    %2136 = vmatprep.subr.mxu0 0.0
    %2137 = vmatpush1.msra.mxu0 0.0
    %2138 = vmatprep.subr.mxu0 0.0
    %2139 = vmatpush1.msra.mxu0 0.0
    %2140 = vmatprep.subr.mxu0 0.0
    %2141 = vmatpush1.msra.mxu0 0.0
    %2142 = vmatprep.subr.mxu0 0.0
    %2143 = vmatpush1.msra.mxu0 0.0
    %2144 = vmatprep.subr.mxu0 0.0
    %2145 = vmatpush1.msra.mxu0 0.0
    %2146 = vmatprep.subr.mxu0 0.0
    %2147 = vmatpush1.msra.mxu0 0.0
    %2148 = vmatprep.subr.mxu0 0.0
    %2149 = vmatpush1.msra.mxu0 0.0
    %2150 = vmatprep.subr.mxu0 0.0
    %2151 = vmatpush1.msra.mxu0 0.0
    %2152 = vmatprep.subr.mxu0 0.0
    %2153 = vmatpush1.msra.mxu0 0.0
    %2154 = vmatprep.subr.mxu0 0.0
    %2155 = vmatpush1.msra.mxu0 0.0
    %2156 = vmatprep.subr.mxu0 0.0
    %2157 = vmatpush1.msra.mxu0 0.0
    %2158 = vmatprep.subr.mxu0 0.0
    %2159 = vmatpush1.msra.mxu0 0.0
    %2160 = vmatprep.subr.mxu0 0.0
    %2161 = vmatpush1.msra.mxu0 0.0
    %2162 = vmatprep.subr.mxu0 0.0
    %2163 = vmatpush1.msra.mxu0 0.0
    %2164 = vmatprep.subr.mxu0 0.0
    %2165 = vmatpush1.msra.mxu0 0.0
    %2166 = vmatprep.subr.mxu0 0.0
    %2167 = vmatpush1.msra.mxu0 0.0
    %2168 = vmatprep.subr.mxu0 0.0
    %2169 = vmatpush1.msra.mxu0 0.0
    %2170 = vmatprep.subr.mxu0 0.0
    %2171 = vmatpush1.msra.mxu0 0.0
    %2172 = vmatprep.subr.mxu0 0.0
    %2173 = vmatpush1.msra.mxu0 0.0
    %2174 = vmatprep.subr.mxu0 0.0
    %2175 = vmatpush1.msra.mxu0 0.0
    %2176 = vmatprep.subr.mxu0 0.0
    %2177 = vmatpush1.msra.mxu0 0.0
    %2178 = vmatprep.subr.mxu0 0.0
    %2179 = vmatpush1.msra.mxu0 0.0
    %2180 = vmatprep.subr.mxu0 0.0
    %2181 = vmatpush1.msra.mxu0 0.0
    %2182 = vmatprep.subr.mxu0 0.0
    %2183 = vmatpush1.msra.mxu0 0.0
    %2184 = vmatprep.subr.mxu0 0.0
    %2185 = vmatpush1.msra.mxu0 0.0
    %2186 = vmatprep.subr.mxu0 0.0
    %2187 = vmatpush1.msra.mxu0 0.0
    %2188 = vmatprep.subr.mxu0 0.0
    %2189 = vmatpush1.msra.mxu0 0.0
    %2190 = vmatprep.mubr.f32.mxu0 0.0
    %2191 = vmatmul.mubr.f32.gmra.mrb[0].mxu0 %v2124
    %v2192 = vpop.f32.mrb[0].mxu0
    %v2193 = vadd.f32 %v2120, %v2192
    %v2194 = vpop.f32.mrb[0].mxu0
    %2195 = vdwg.mxu0
    %v2196 = vmax.f32 %v2193, 0.0
    %v2197 = vld [vmem:[%s10] sm:$0xff]
    %v2198 = vld [vmem:[%s10 + $0x8] sm:$0xff]
    %v2199 = vld [vmem:[%s11] sm:$0x1]
    %v2201 = vlaneseq
    %v2202 = vshrl.u32 %v2201, 7
    %v2203 = vsub.s32 0, %v2202
    %v2204 = vrot.slane %v2199, %v2203
    %vm2206 = vcmask 130048
    %v2208 = vsel %vm2206, %v2196, 0
    %2210 = vmatprep.subr.mxu0 0.0
    %2211 = vmatpush1.msra.mxu0 %v2197
    %2212 = vmatprep.subr.mxu0 0.0
    %2213 = vmatpush1.msra.mxu0 %v2198
    %2214 = vmatprep.subr.mxu0 0.0
    %2215 = vmatpush1.msra.mxu0 0.0
    %2216 = vmatprep.subr.mxu0 0.0
    %2217 = vmatpush1.msra.mxu0 0.0
    %2218 = vmatprep.subr.mxu0 0.0
    %2219 = vmatpush1.msra.mxu0 0.0
    %2220 = vmatprep.subr.mxu0 0.0
    %2221 = vmatpush1.msra.mxu0 0.0
    %2222 = vmatprep.subr.mxu0 0.0
    %2223 = vmatpush1.msra.mxu0 0.0
    %2224 = vmatprep.subr.mxu0 0.0
    %2225 = vmatpush1.msra.mxu0 0.0
    %2226 = vmatprep.subr.mxu0 0.0
    %2227 = vmatpush1.msra.mxu0 0.0
    %2228 = vmatprep.subr.mxu0 0.0
    %2229 = vmatpush1.msra.mxu0 0.0
    %2230 = vmatprep.subr.mxu0 0.0
    %2231 = vmatpush1.msra.mxu0 0.0
    %2232 = vmatprep.subr.mxu0 0.0
    %2233 = vmatpush1.msra.mxu0 0.0
    %2234 = vmatprep.subr.mxu0 0.0
    %2235 = vmatpush1.msra.mxu0 0.0
    %2236 = vmatprep.subr.mxu0 0.0
    %2237 = vmatpush1.msra.mxu0 0.0
    %2238 = vmatprep.subr.mxu0 0.0
    %2239 = vmatpush1.msra.mxu0 0.0
    %2240 = vmatprep.subr.mxu0 0.0
    %2241 = vmatpush1.msra.mxu0 0.0
    %2242 = vmatprep.subr.mxu0 0.0
    %2243 = vmatpush1.msra.mxu0 0.0
    %2244 = vmatprep.subr.mxu0 0.0
    %2245 = vmatpush1.msra.mxu0 0.0
    %2246 = vmatprep.subr.mxu0 0.0
    %2247 = vmatpush1.msra.mxu0 0.0
    %2248 = vmatprep.subr.mxu0 0.0
    %2249 = vmatpush1.msra.mxu0 0.0
    %2250 = vmatprep.subr.mxu0 0.0
    %2251 = vmatpush1.msra.mxu0 0.0
    %2252 = vmatprep.subr.mxu0 0.0
    %2253 = vmatpush1.msra.mxu0 0.0
    %2254 = vmatprep.subr.mxu0 0.0
    %2255 = vmatpush1.msra.mxu0 0.0
    %2256 = vmatprep.subr.mxu0 0.0
    %2257 = vmatpush1.msra.mxu0 0.0
    %2258 = vmatprep.subr.mxu0 0.0
    %2259 = vmatpush1.msra.mxu0 0.0
    %2260 = vmatprep.subr.mxu0 0.0
    %2261 = vmatpush1.msra.mxu0 0.0
    %2262 = vmatprep.subr.mxu0 0.0
    %2263 = vmatpush1.msra.mxu0 0.0
    %2264 = vmatprep.subr.mxu0 0.0
    %2265 = vmatpush1.msra.mxu0 0.0
    %2266 = vmatprep.subr.mxu0 0.0
    %2267 = vmatpush1.msra.mxu0 0.0
    %2268 = vmatprep.subr.mxu0 0.0
    %2269 = vmatpush1.msra.mxu0 0.0
    %2270 = vmatprep.subr.mxu0 0.0
    %2271 = vmatpush1.msra.mxu0 0.0
    %2272 = vmatprep.subr.mxu0 0.0
    %2273 = vmatpush1.msra.mxu0 0.0
    %2274 = vmatprep.mubr.f32.mxu0 0.0
    %2275 = vmatmul.mubr.f32.gmra.mrb[0].mxu0 %v2208
    %v2276 = vpop.f32.mrb[0].mxu0
    %v2277 = vadd.f32 %v2204, %v2276
    %v2278 = vpop.f32.mrb[0].mxu0
    %2279 = vdwg.mxu0
    %vm2280 = vcmask 17408
    %2281 = vst.msk [vmem:[#allocation6] sm:$0x3] %vm2280, %v2277
    // Predicated region
    $region54: #{tpu_custom_call.1} parent=1 // pred_check
      _
    $region55: #{tpu_custom_call.1} parent=1 // pred_check_branch
      %2283 = sbr.rel (0) target = $region57
    $region56: #{tpu_custom_call.1} parent=1 // pred_region
      %s2285 = ssub.s32 32, 32
      %2286 = vsyncadd [#allocation5], %s2285
      %s2288 = sshll.u32 [#allocation6], 4
      %s2289 = int_to_ptr.vmem [resolvable:$true] %s2288
      %2291 = dma.vmem_to_hbm [thread:$0]  %s2289, 32, %s12, [#allocation5]
    $region57: #{tpu_custom_call.1} parent=1 // pred_fallthru
      _
    // Predicated region
    $region58: #{tpu_custom_call.1} parent=1 // pred_check
      _
    $region59: #{tpu_custom_call.1} parent=1 // pred_check_branch
      %2293 = sbr.rel (0) target = $region61
    $region60: #{tpu_custom_call.1} parent=1 // pred_region
      %2294 = dma.done [#allocation5], 32
    $region61: #{tpu_custom_call.1} parent=1 // pred_fallthru
      _
    %2295 = vsyncpa [#allocation4], 1
    %2296 = vsyncpa [#allocation5], 1

</llo_original>
